<compile_context>
chip_gen: v7x
topology: tpu7x:2x2x1
jax: 0.10.0
libtpu: 0.0.40
codegen_flags: <defaults>
</compile_context>

<pallas_src>
import functools

import jax
import jax.numpy as jnp
import numpy as np
from jax import lax
from jax.experimental import pallas as pl
from jax.experimental.pallas import tpu as pltpu

_SUBLANE = 8
_LANE = 128


def _round_up(x, m):
    return (x + m - 1) // m * m


# --------------------------------------------------------------------------- #
# Kernel: serial GRU recurrence over one (batch_tile, time_chunk) block
# --------------------------------------------------------------------------- #
def _gru_chunk_kernel(gi_ref, wh_hbm, bhn_ref,            # inputs
                      out_ref,                            # output
                      wh_vmem, h_scr, dma_sem,            # scratch
                      *, hidden_pad, time_chunk, seq_len, mask_tail, unroll):
    """gi_ref : (time_chunk*8, 3*Hp) f32  precomputed input gates (bias folded)
    wh_hbm  : (Hp, 3*Hp)  fused [W_hr|W_hz|W_hn]^T   (memory_space=ANY)
    bhn_ref : (1, Hp)     b_hn (kept separate: gated by r, as in PyTorch)
    out_ref : (8, Hp)     hidden state of this batch tile
    """
    c = pl.program_id(1)
    Hp = hidden_pad
    Bt = h_scr.shape[0]

    # One-time-per-batch-tile setup: DMA the grid-invariant fused hidden
    # weights HBM -> VMEM (single-buffered) and zero the hidden state.
    @pl.when(c == 0)
    def _():
        cp = pltpu.make_async_copy(wh_hbm, wh_vmem, dma_sem.at[0])
        cp.start()
        cp.wait()
        h_scr[...] = jnp.zeros_like(h_scr)

    # Hoist the (tiny, 1-vreg) n-gate hidden-bias broadcast out of the loop.
    bhn = jnp.broadcast_to(bhn_ref[...], (Bt, Hp))
    base = c * time_chunk

    def step(t, h):
        row = pl.multiple_of(t * Bt, Bt)            # Bt == 8 sublanes
        g = gi_ref[pl.ds(row, Bt), :]               # (8, 3Hp) precomputed
        # ONE fused (8,Hp)@(Hp,3Hp) MXU matmul per step; re-stream Wh from
        # VMEM each step (do not pin it in vregs across the unrolled loop).
        gh = jnp.dot(h.astype(wh_vmem.dtype), wh_vmem[...],
                     preferred_element_type=jnp.float32)
        # Fused r/z sigmoid: one EUP launch over 2*Hp lanes. Gate order r,z,n.
        rz = jax.nn.sigmoid(g[:, :2 * Hp] + gh[:, :2 * Hp])
        r = rz[:, :Hp]
        z = rz[:, Hp:]
        n = jnp.tanh(g[:, 2 * Hp:] + r * (gh[:, 2 * Hp:] + bhn))
        h_new = (1.0 - z) * n + z * h
        if mask_tail:   # static flag; only emitted when T was padded up
            h_new = jnp.where(base + t < seq_len, h_new, h)
        return h_new

    h_new = lax.fori_loop(0, time_chunk, step, h_scr[...], unroll=unroll)
    h_scr[...] = h_new
    # Write every chunk: single (8,128*k) store, free under the recurrence,
    # no reliance on resident-output writeback semantics.
    out_ref[...] = h_new.astype(out_ref.dtype)


# --------------------------------------------------------------------------- #
# Parameter packing (PyTorch layout -> fused, padded, kernel layout)
# --------------------------------------------------------------------------- #
def _pack_gru_params(params, *, mxu_dtype):
    w_ih = jnp.asarray(params["w_ih"], jnp.float32)   # (3H, E)
    w_hh = jnp.asarray(params["w_hh"], jnp.float32)   # (3H, H)
    b_ih = jnp.asarray(params["b_ih"], jnp.float32)   # (3H,)
    b_hh = jnp.asarray(params["b_hh"], jnp.float32)   # (3H,)

    H = w_hh.shape[1]
    E = w_ih.shape[1]
    Hp = _round_up(H, _LANE)

    def split3(a):
        return a[:H], a[H:2 * H], a[2 * H:]

    w_ir, w_iz, w_in = split3(w_ih)
    w_hr, w_hz, w_hn = split3(w_hh)
    b_ir, b_iz, b_in = split3(b_ih)
    b_hr, b_hz, b_hn = split3(b_hh)

    def pad_cols(w):                     # (rows, H) -> (rows, Hp)
        return jnp.pad(w, ((0, 0), (0, Hp - H)))

    # Input-projection weights fused over gates. E is NOT padded: the input
    # projection runs as a plain XLA matmul outside the kernel.
    wi = jnp.concatenate([pad_cols(w.T) for w in (w_ir, w_iz, w_in)],
                         axis=1).astype(mxu_dtype)             # (E, 3Hp)

    def pad_hh(w):                       # (H, H) -> (Hp, Hp)
        return jnp.pad(w.T, ((0, Hp - H), (0, Hp - H)))

    wh = jnp.concatenate([pad_hh(w) for w in (w_hr, w_hz, w_hn)],
                         axis=1).astype(mxu_dtype)             # (Hp, 3Hp)

    def pad_b(b):
        return jnp.pad(b, (0, Hp - H))

    # [b_ir+b_hr | b_iz+b_hz | b_in] folded into the precomputed gi.
    bi = jnp.concatenate(
        [pad_b(b_ir + b_hr), pad_b(b_iz + b_hz), pad_b(b_in)]).reshape(1, 3 * Hp)
    # b_hn stays separate so it is gated by r inside the kernel.
    bhn = pad_b(b_hn).reshape(1, Hp)
    return wi, wh, bi, bhn, H, Hp, E


# --------------------------------------------------------------------------- #
# Forward wrapper (== RnnEncoder.forward)
# --------------------------------------------------------------------------- #
def rnn_encoder_forward(tokens, params, lengths=None, *,
                        mxu_dtype=jnp.bfloat16, time_chunk=None):
    """tokens: (T, B, E) float32, seq-major like PyTorch's default GRU layout.
    `lengths` is accepted but ignored (the reference forward discards the
    packed sequence). Returns (B, H) float32: the final GRU hidden state.

    Default mxu_dtype=bfloat16 (recommended on v5e/v6e/v7x); accumulation and
    all elementwise/transcendental math stay f32. Pass float32 for exact
    f32-operand semantics.
    """
    del lengths  # dead in the reference forward
    tokens = jnp.asarray(tokens, jnp.float32)
    T, B, E = tokens.shape

    wi, wh, bi, bhn, H, Hp, Ew = _pack_gru_params(params, mxu_dtype=mxu_dtype)
    assert E == Ew

    if T == 0:  # empty grid would leave the output undefined
        return jnp.zeros((B, H), jnp.float32)

    Bp = _round_up(max(B, 1), _SUBLANE)
    nb = Bp // _SUBLANE

    # Time-chunk chooser: cap 64 steps/chunk, minimize tail-padding waste.
    if time_chunk is None:
        cap = min(T, 64)
        num_chunks = -(-T // cap)
        time_chunk = -(-T // num_chunks)
    else:
        time_chunk = int(time_chunk)
        num_chunks = -(-T // time_chunk)
    padded_T = time_chunk * num_chunks
    mask_tail = padded_T != T
    unroll = time_chunk if time_chunk <= 16 else 8

    # Hoisted input projection: ONE XLA matmul for all gates & timesteps,
    # entirely off the serial recurrence (and pipelined into the kernel as
    # gi chunks by the BlockSpec). Biases b_r/b_z/b_in (+b_hr/+b_hz) folded in.
    gi = jnp.dot(tokens.reshape(T * B, E).astype(mxu_dtype), wi,
                 preferred_element_type=jnp.float32) + bi       # (T*B, 3Hp) f32
    gi = gi.reshape(T, B, 3 * Hp)
    gi = jnp.pad(gi, ((0, padded_T - T), (0, Bp - B), (0, 0)))
    # Layout (batch_tile, time-major rows within tile, 3Hp): each grid block
    # is a contiguous, lane-dense slab.
    gi = (gi.reshape(padded_T, nb, _SUBLANE, 3 * Hp)
            .transpose(1, 0, 2, 3)
            .reshape(nb, padded_T * _SUBLANE, 3 * Hp))

    kernel = functools.partial(
        _gru_chunk_kernel, hidden_pad=Hp, time_chunk=time_chunk,
        seq_len=T, mask_tail=mask_tail, unroll=unroll)

    # Explicit VMEM budget: gi block (double-buffered) + resident Wh + out +
    # bias + hidden-state scratch, with 4x headroom, clamped to [32, 64] MiB
    # (safe on v5e/v6e's 128 MiB and v7x's 64 MiB physical VMEM).
    itemsize = jnp.dtype(mxu_dtype).itemsize
    est_vmem = (2 * time_chunk * _SUBLANE * 3 * Hp * 4
                + Hp * 3 * Hp * itemsize
                + 2 * _SUBLANE * Hp * 4
                + 2 * Hp * 4
                + _SUBLANE * Hp * 4)
    vmem_limit = int(min(64 * 1024 * 1024, max(32 * 1024 * 1024, 4 * est_vmem)))

    out = pl.pallas_call(
        kernel,
        out_shape=jax.ShapeDtypeStruct((Bp, Hp), jnp.float32),
        grid_spec=pltpu.PrefetchScalarGridSpec(
            num_scalar_prefetch=0,
            grid=(nb, num_chunks),          # (batch tiles, time chunks)
            in_specs=[
                # gi chunk for (batch tile b, chunk c); leading dim squeezed.
                pl.BlockSpec((None, time_chunk * _SUBLANE, 3 * Hp),
                             lambda b, c: (b, c, 0)),
                # fused hidden weights stay in HBM; DMA'd once per batch tile
                pl.BlockSpec(memory_space=pl.ANY),          # Wh (Hp, 3Hp)
                pl.BlockSpec((1, Hp), lambda b, c: (0, 0)),  # b_hn
            ],
            out_specs=pl.BlockSpec((_SUBLANE, Hp), lambda b, c: (b, 0)),
            scratch_shapes=[
                pltpu.VMEM((Hp, 3 * Hp), mxu_dtype),        # Wh resident
                pltpu.VMEM((_SUBLANE, Hp), jnp.float32),    # hidden state
                pltpu.SemaphoreType.DMA((1,)),
            ],
        ),
        compiler_params=pltpu.CompilerParams(
            # batch tiles are independent (v7x megacore); time chunks carry h
            dimension_semantics=("parallel", "arbitrary"),
            vmem_limit_bytes=vmem_limit),
    )(gi, wh, bhn)

    return out[:B, :H]


# --------------------------------------------------------------------------- #
# Init + pure-JAX reference
# --------------------------------------------------------------------------- #
def make_gru_params(key, embedding_dim, hidden_dim):
    """nn.GRU init: U(-1/sqrt(H), 1/sqrt(H)); PyTorch layout,
    weight_ih_l0 (3H, E), weight_hh_l0 (3H, H), biases (3H,), gate order r,z,n."""
    H, E = hidden_dim, embedding_dim
    k = 1.0 / np.sqrt(H)
    ks = jax.random.split(key, 4)
    return {
        "w_ih": jax.random.uniform(ks[0], (3 * H, E), jnp.float32, -k, k),
        "w_hh": jax.random.uniform(ks[1], (3 * H, H), jnp.float32, -k, k),
        "b_ih": jax.random.uniform(ks[2], (3 * H,), jnp.float32, -k, k),
        "b_hh": jax.random.uniform(ks[3], (3 * H,), jnp.float32, -k, k),
    }


def gru_reference(tokens, params, *, mxu_dtype=jnp.float32):
    """Pure-JAX reference (lax.scan) with the same mixed-precision recipe."""
    w_ih, w_hh = params["w_ih"], params["w_hh"]
    b_ih, b_hh = params["b_ih"], params["b_hh"]
    H = w_hh.shape[1]
    B = tokens.shape[1]

    def split3(a):
        return a[:H], a[H:2 * H], a[2 * H:]

    w_ir, w_iz, w_in = [w.T.astype(mxu_dtype) for w in split3(w_ih)]
    w_hr, w_hz, w_hn = [w.T.astype(mxu_dtype) for w in split3(w_hh)]
    b_ir, b_iz, b_in = split3(b_ih)
    b_hr, b_hz, b_hn = split3(b_hh)

    def dot(a, b):
        return jnp.dot(a.astype(mxu_dtype), b, preferred_element_type=jnp.float32)

    def step(h, x):
        r = jax.nn.sigmoid(dot(x, w_ir) + dot(h, w_hr) + b_ir + b_hr)
        z = jax.nn.sigmoid(dot(x, w_iz) + dot(h, w_hz) + b_iz + b_hz)
        n = jnp.tanh(dot(x, w_in) + b_in + r * (dot(h, w_hn) + b_hn))
        return (1.0 - z) * n + z * h, None

    h0 = jnp.zeros((B, H), jnp.float32)
    h_final, _ = lax.scan(step, h0, tokens)
    return h_final


# --------------------------------------------------------------------------- #
if __name__ == "__main__":
    T, B, E, H = 8, 4, 16, 32   # seq=8, batch=4, embedding_dim=16, output_dim=32

    key = jax.random.PRNGKey(0)
    k_tok, k_par = jax.random.split(key)
    tokens = jax.random.normal(k_tok, (T, B, E), jnp.float32)  # (seq, batch, dim)
    lengths = jnp.full((B,), T, jnp.int32)  # unused by forward (pack is discarded)
    params = make_gru_params(k_par, E, H)

    # Default path: bf16 MXU operands, f32 accumulation + f32 elementwise/EUP.
    out = jax.block_until_ready(rnn_encoder_forward(tokens, params, lengths))
    ref_bf16 = jax.block_until_ready(
        gru_reference(tokens, params, mxu_dtype=jnp.bfloat16))
    assert out.shape == (B, H)
    np.testing.assert_allclose(np.asarray(out), np.asarray(ref_bf16),
                               atol=5e-3, rtol=5e-3)

    # f32-operand path (exact PyTorch-GRU semantics).
    out_f32 = jax.block_until_ready(
        rnn_encoder_forward(tokens, params, lengths, mxu_dtype=jnp.float32))
    ref_f32 = jax.block_until_ready(
        gru_reference(tokens, params, mxu_dtype=jnp.float32))
    np.testing.assert_allclose(np.asarray(out_f32), np.asarray(ref_f32),
                               atol=1e-4, rtol=1e-4)

    # Multi-chunk carry + non-divisible-T tail-mask path (forced chunking).
    out_chunked = jax.block_until_ready(
        rnn_encoder_forward(tokens, params, lengths,
                            mxu_dtype=jnp.float32, time_chunk=3))
    np.testing.assert_allclose(np.asarray(out_chunked), np.asarray(ref_f32),
                               atol=1e-4, rtol=1e-4)

    print("KERNEL_OK")
</pallas_src>

<mosaic_0001>
module attributes {stable_mosaic.version = 11 : i64} {
  func.func @_gru_chunk_kernel(%arg0: i32, %arg1: i32, %arg2: memref<1x64x384xf32, #tpu.memory_space<vmem>>, %arg3: memref<128x384xbf16, #tpu.memory_space<any>>, %arg4: memref<1x128xf32, #tpu.memory_space<vmem>>, %arg5: memref<8x128xf32, #tpu.memory_space<vmem>>, %arg6: memref<128x384xbf16, #tpu.memory_space<vmem>>, %arg7: memref<8x128xf32, #tpu.memory_space<vmem>>, %arg8: memref<1x!tpu.dma_semaphore, #tpu.memory_space<semaphore_mem>>) attributes {dimension_semantics = [#tpu.dimension_semantics<parallel>, #tpu.dimension_semantics<arbitrary>], iteration_bounds = array<i64: 1, 1>, scalar_prefetch = 0 : i64, scratch_operands = 3 : i64, tpu.core_type = #tpu.core_type<tc>, window_params = [{transform_indices = @transform_0, window_bounds = array<i64: 1, 64, 384>}, {}, {pipeline_mode = #tpu.pipeline_mode<synchronous>, transform_indices = @transform_2, window_bounds = array<i64: 1, 128>}, {transform_indices = @transform_3, window_bounds = array<i64: 8, 128>}]} {
    %c0_i32 = arith.constant 0 : i32
    %0 = arith.cmpi eq, %arg1, %c0_i32 : i32
    %1 = arith.extui %0 : i1 to i32
    %c0_i32_0 = arith.constant 0 : i32
    %2 = arith.cmpi ne, %1, %c0_i32_0 : i32
    scf.if %2 {
      %c0_i32_72 = arith.constant 0 : i32
      %241 = tpu.memref_slice %arg8[%c0_i32_72] : memref<1x!tpu.dma_semaphore, #tpu.memory_space<semaphore_mem>> -> memref<1x!tpu.dma_semaphore, #tpu.memory_space<semaphore_mem>>
      %242 = tpu.memref_squeeze %241 : memref<1x!tpu.dma_semaphore, #tpu.memory_space<semaphore_mem>> -> memref<!tpu.dma_semaphore, #tpu.memory_space<semaphore_mem>>
      tpu.enqueue_dma source(%arg3 : memref<128x384xbf16, #tpu.memory_space<any>>) target(%arg6 : memref<128x384xbf16, #tpu.memory_space<vmem>>) target_semaphore(%242 : memref<!tpu.dma_semaphore, #tpu.memory_space<semaphore_mem>>)
      %c0_i32_73 = arith.constant 0 : i32
      %243 = tpu.memref_slice %arg8[%c0_i32_73] : memref<1x!tpu.dma_semaphore, #tpu.memory_space<semaphore_mem>> -> memref<1x!tpu.dma_semaphore, #tpu.memory_space<semaphore_mem>>
      %244 = tpu.memref_squeeze %243 : memref<1x!tpu.dma_semaphore, #tpu.memory_space<semaphore_mem>> -> memref<!tpu.dma_semaphore, #tpu.memory_space<semaphore_mem>>
      tpu.wait_dma2 semaphore(%244 : memref<!tpu.dma_semaphore, #tpu.memory_space<semaphore_mem>>) src(%arg3 : memref<128x384xbf16, #tpu.memory_space<any>>) dst(%arg6 : memref<128x384xbf16, #tpu.memory_space<vmem>>)
      %cst_74 = arith.constant 0.000000e+00 : f32
      %245 = vector.broadcast %cst_74 : f32 to vector<8x128xf32>
      %c0_75 = arith.constant 0 : index
      %c0_76 = arith.constant 0 : index
      %246 = vector.load %arg7[%c0_75, %c0_76] : memref<8x128xf32, #tpu.memory_space<vmem>>, vector<8x128xf32>
      tpu.vector_store %arg7[%c0_75, %c0_76], %245 {strides = array<i32>} : memref<8x128xf32, #tpu.memory_space<vmem>>, vector<8x128xf32>,
    } else {
    }
    %c0 = arith.constant 0 : index
    %c0_1 = arith.constant 0 : index
    %3 = vector.load %arg4[%c0, %c0_1] : memref<1x128xf32, #tpu.memory_space<vmem>>, vector<1x128xf32>
    %4 = vector.shape_cast %3 : vector<1x128xf32> to vector<1x128xf32>
    %5 = vector.broadcast %4 : vector<1x128xf32> to vector<8x128xf32>
    %c0_2 = arith.constant 0 : index
    %c0_3 = arith.constant 0 : index
    %6 = vector.load %arg7[%c0_2, %c0_3] : memref<8x128xf32, #tpu.memory_space<vmem>>, vector<8x128xf32>
    %c0_i32_4 = arith.constant 0 : i32
    %c8_i32 = arith.constant 8 : i32
    %7 = arith.muli %c0_i32_4, %c8_i32 : i32
    %8 = tpu.assume_multiple %7, 8 : i32
    %c0_5 = arith.constant 0 : index
    %9 = arith.index_cast %8 : i32 to index
    %c0_6 = arith.constant 0 : index
    %10 = vector.load %arg2[%c0_5, %9, %c0_6] : memref<1x64x384xf32, #tpu.memory_space<vmem>>, vector<1x8x384xf32>
    %11 = vector.shape_cast %10 : vector<1x8x384xf32> to vector<8x384xf32>
    %12 = arith.truncf %6 : vector<8x128xf32> to vector<8x128xbf16>
    %c0_7 = arith.constant 0 : index
    %c0_8 = arith.constant 0 : index
    %13 = vector.load %arg6[%c0_7, %c0_8] : memref<128x384xbf16, #tpu.memory_space<vmem>>, vector<128x384xbf16>
    %cst = arith.constant dense<0.000000e+00> : vector<8x384xf32>
    %14 = tpu.matmul %12, %13, %cst {dimension_numbers = #tpu.dot_dimension_numbers<[1], [0], [0], [1], [0, 0, 1, 1], [], []>} : vector<8x128xbf16>, vector<128x384xbf16>, vector<8x384xf32> -> vector<8x384xf32>
    %15 = vector.extract_strided_slice %11 {offsets = [0, 0], sizes = [8, 256], strides = [1, 1]} : vector<8x384xf32> to vector<8x256xf32>
    %16 = vector.extract_strided_slice %14 {offsets = [0, 0], sizes = [8, 256], strides = [1, 1]} : vector<8x384xf32> to vector<8x256xf32>
    %17 = arith.addf %15, %16 : vector<8x256xf32>
    %18 = arith.negf %17 : vector<8x256xf32>
    %19 = math.exp %18 : vector<8x256xf32>
    %cst_9 = arith.constant 1.000000e+00 : f32
    %20 = vector.broadcast %cst_9 : f32 to vector<8x256xf32>
    %21 = arith.addf %20, %19 : vector<8x256xf32>
    %22 = arith.divf %20, %21 : vector<8x256xf32>
    %23 = vector.extract_strided_slice %22 {offsets = [0, 0], sizes = [8, 128], strides = [1, 1]} : vector<8x256xf32> to vector<8x128xf32>
    %24 = vector.extract_strided_slice %22 {offsets = [0, 128], sizes = [8, 128], strides = [1, 1]} : vector<8x256xf32> to vector<8x128xf32>
    %25 = vector.extract_strided_slice %11 {offsets = [0, 256], sizes = [8, 128], strides = [1, 1]} : vector<8x384xf32> to vector<8x128xf32>
    %26 = vector.extract_strided_slice %14 {offsets = [0, 256], sizes = [8, 128], strides = [1, 1]} : vector<8x384xf32> to vector<8x128xf32>
    %27 = arith.addf %26, %5 : vector<8x128xf32>
    %28 = arith.mulf %23, %27 : vector<8x128xf32>
    %29 = arith.addf %25, %28 : vector<8x128xf32>
    %30 = math.tanh %29 : vector<8x128xf32>
    %cst_10 = arith.constant 1.000000e+00 : f32
    %31 = vector.broadcast %cst_10 : f32 to vector<8x128xf32>
    %32 = arith.subf %31, %24 : vector<8x128xf32>
    %33 = arith.mulf %32, %30 : vector<8x128xf32>
    %34 = arith.mulf %24, %6 : vector<8x128xf32>
    %35 = arith.addf %33, %34 : vector<8x128xf32>
    %c1_i32 = arith.constant 1 : i32
    %c8_i32_11 = arith.constant 8 : i32
    %36 = arith.muli %c1_i32, %c8_i32_11 : i32
    %37 = tpu.assume_multiple %36, 8 : i32
    %c0_12 = arith.constant 0 : index
    %38 = arith.index_cast %37 : i32 to index
    %c0_13 = arith.constant 0 : index
    %39 = vector.load %arg2[%c0_12, %38, %c0_13] : memref<1x64x384xf32, #tpu.memory_space<vmem>>, vector<1x8x384xf32>
    %40 = vector.shape_cast %39 : vector<1x8x384xf32> to vector<8x384xf32>
    %41 = arith.truncf %35 : vector<8x128xf32> to vector<8x128xbf16>
    %c0_14 = arith.constant 0 : index
    %c0_15 = arith.constant 0 : index
    %42 = vector.load %arg6[%c0_14, %c0_15] : memref<128x384xbf16, #tpu.memory_space<vmem>>, vector<128x384xbf16>
    %cst_16 = arith.constant dense<0.000000e+00> : vector<8x384xf32>
    %43 = tpu.matmul %41, %42, %cst_16 {dimension_numbers = #tpu.dot_dimension_numbers<[1], [0], [0], [1], [0, 0, 1, 1], [], []>} : vector<8x128xbf16>, vector<128x384xbf16>, vector<8x384xf32> -> vector<8x384xf32>
    %44 = vector.extract_strided_slice %40 {offsets = [0, 0], sizes = [8, 256], strides = [1, 1]} : vector<8x384xf32> to vector<8x256xf32>
    %45 = vector.extract_strided_slice %43 {offsets = [0, 0], sizes = [8, 256], strides = [1, 1]} : vector<8x384xf32> to vector<8x256xf32>
    %46 = arith.addf %44, %45 : vector<8x256xf32>
    %47 = arith.negf %46 : vector<8x256xf32>
    %48 = math.exp %47 : vector<8x256xf32>
    %cst_17 = arith.constant 1.000000e+00 : f32
    %49 = vector.broadcast %cst_17 : f32 to vector<8x256xf32>
    %50 = arith.addf %49, %48 : vector<8x256xf32>
    %51 = arith.divf %49, %50 : vector<8x256xf32>
    %52 = vector.extract_strided_slice %51 {offsets = [0, 0], sizes = [8, 128], strides = [1, 1]} : vector<8x256xf32> to vector<8x128xf32>
    %53 = vector.extract_strided_slice %51 {offsets = [0, 128], sizes = [8, 128], strides = [1, 1]} : vector<8x256xf32> to vector<8x128xf32>
    %54 = vector.extract_strided_slice %40 {offsets = [0, 256], sizes = [8, 128], strides = [1, 1]} : vector<8x384xf32> to vector<8x128xf32>
    %55 = vector.extract_strided_slice %43 {offsets = [0, 256], sizes = [8, 128], strides = [1, 1]} : vector<8x384xf32> to vector<8x128xf32>
    %56 = arith.addf %55, %5 : vector<8x128xf32>
    %57 = arith.mulf %52, %56 : vector<8x128xf32>
    %58 = arith.addf %54, %57 : vector<8x128xf32>
    %59 = math.tanh %58 : vector<8x128xf32>
    %cst_18 = arith.constant 1.000000e+00 : f32
    %60 = vector.broadcast %cst_18 : f32 to vector<8x128xf32>
    %61 = arith.subf %60, %53 : vector<8x128xf32>
    %62 = arith.mulf %61, %59 : vector<8x128xf32>
    %63 = arith.mulf %53, %35 : vector<8x128xf32>
    %64 = arith.addf %62, %63 : vector<8x128xf32>
    %c2_i32 = arith.constant 2 : i32
    %c8_i32_19 = arith.constant 8 : i32
    %65 = arith.muli %c2_i32, %c8_i32_19 : i32
    %66 = tpu.assume_multiple %65, 8 : i32
    %c0_20 = arith.constant 0 : index
    %67 = arith.index_cast %66 : i32 to index
    %c0_21 = arith.constant 0 : index
    %68 = vector.load %arg2[%c0_20, %67, %c0_21] : memref<1x64x384xf32, #tpu.memory_space<vmem>>, vector<1x8x384xf32>
    %69 = vector.shape_cast %68 : vector<1x8x384xf32> to vector<8x384xf32>
    %70 = arith.truncf %64 : vector<8x128xf32> to vector<8x128xbf16>
    %c0_22 = arith.constant 0 : index
    %c0_23 = arith.constant 0 : index
    %71 = vector.load %arg6[%c0_22, %c0_23] : memref<128x384xbf16, #tpu.memory_space<vmem>>, vector<128x384xbf16>
    %cst_24 = arith.constant dense<0.000000e+00> : vector<8x384xf32>
    %72 = tpu.matmul %70, %71, %cst_24 {dimension_numbers = #tpu.dot_dimension_numbers<[1], [0], [0], [1], [0, 0, 1, 1], [], []>} : vector<8x128xbf16>, vector<128x384xbf16>, vector<8x384xf32> -> vector<8x384xf32>
    %73 = vector.extract_strided_slice %69 {offsets = [0, 0], sizes = [8, 256], strides = [1, 1]} : vector<8x384xf32> to vector<8x256xf32>
    %74 = vector.extract_strided_slice %72 {offsets = [0, 0], sizes = [8, 256], strides = [1, 1]} : vector<8x384xf32> to vector<8x256xf32>
    %75 = arith.addf %73, %74 : vector<8x256xf32>
    %76 = arith.negf %75 : vector<8x256xf32>
    %77 = math.exp %76 : vector<8x256xf32>
    %cst_25 = arith.constant 1.000000e+00 : f32
    %78 = vector.broadcast %cst_25 : f32 to vector<8x256xf32>
    %79 = arith.addf %78, %77 : vector<8x256xf32>
    %80 = arith.divf %78, %79 : vector<8x256xf32>
    %81 = vector.extract_strided_slice %80 {offsets = [0, 0], sizes = [8, 128], strides = [1, 1]} : vector<8x256xf32> to vector<8x128xf32>
    %82 = vector.extract_strided_slice %80 {offsets = [0, 128], sizes = [8, 128], strides = [1, 1]} : vector<8x256xf32> to vector<8x128xf32>
    %83 = vector.extract_strided_slice %69 {offsets = [0, 256], sizes = [8, 128], strides = [1, 1]} : vector<8x384xf32> to vector<8x128xf32>
    %84 = vector.extract_strided_slice %72 {offsets = [0, 256], sizes = [8, 128], strides = [1, 1]} : vector<8x384xf32> to vector<8x128xf32>
    %85 = arith.addf %84, %5 : vector<8x128xf32>
    %86 = arith.mulf %81, %85 : vector<8x128xf32>
    %87 = arith.addf %83, %86 : vector<8x128xf32>
    %88 = math.tanh %87 : vector<8x128xf32>
    %cst_26 = arith.constant 1.000000e+00 : f32
    %89 = vector.broadcast %cst_26 : f32 to vector<8x128xf32>
    %90 = arith.subf %89, %82 : vector<8x128xf32>
    %91 = arith.mulf %90, %88 : vector<8x128xf32>
    %92 = arith.mulf %82, %64 : vector<8x128xf32>
    %93 = arith.addf %91, %92 : vector<8x128xf32>
    %c3_i32 = arith.constant 3 : i32
    %c8_i32_27 = arith.constant 8 : i32
    %94 = arith.muli %c3_i32, %c8_i32_27 : i32
    %95 = tpu.assume_multiple %94, 8 : i32
    %c0_28 = arith.constant 0 : index
    %96 = arith.index_cast %95 : i32 to index
    %c0_29 = arith.constant 0 : index
    %97 = vector.load %arg2[%c0_28, %96, %c0_29] : memref<1x64x384xf32, #tpu.memory_space<vmem>>, vector<1x8x384xf32>
    %98 = vector.shape_cast %97 : vector<1x8x384xf32> to vector<8x384xf32>
    %99 = arith.truncf %93 : vector<8x128xf32> to vector<8x128xbf16>
    %c0_30 = arith.constant 0 : index
    %c0_31 = arith.constant 0 : index
    %100 = vector.load %arg6[%c0_30, %c0_31] : memref<128x384xbf16, #tpu.memory_space<vmem>>, vector<128x384xbf16>
    %cst_32 = arith.constant dense<0.000000e+00> : vector<8x384xf32>
    %101 = tpu.matmul %99, %100, %cst_32 {dimension_numbers = #tpu.dot_dimension_numbers<[1], [0], [0], [1], [0, 0, 1, 1], [], []>} : vector<8x128xbf16>, vector<128x384xbf16>, vector<8x384xf32> -> vector<8x384xf32>
    %102 = vector.extract_strided_slice %98 {offsets = [0, 0], sizes = [8, 256], strides = [1, 1]} : vector<8x384xf32> to vector<8x256xf32>
    %103 = vector.extract_strided_slice %101 {offsets = [0, 0], sizes = [8, 256], strides = [1, 1]} : vector<8x384xf32> to vector<8x256xf32>
    %104 = arith.addf %102, %103 : vector<8x256xf32>
    %105 = arith.negf %104 : vector<8x256xf32>
    %106 = math.exp %105 : vector<8x256xf32>
    %cst_33 = arith.constant 1.000000e+00 : f32
    %107 = vector.broadcast %cst_33 : f32 to vector<8x256xf32>
    %108 = arith.addf %107, %106 : vector<8x256xf32>
    %109 = arith.divf %107, %108 : vector<8x256xf32>
    %110 = vector.extract_strided_slice %109 {offsets = [0, 0], sizes = [8, 128], strides = [1, 1]} : vector<8x256xf32> to vector<8x128xf32>
    %111 = vector.extract_strided_slice %109 {offsets = [0, 128], sizes = [8, 128], strides = [1, 1]} : vector<8x256xf32> to vector<8x128xf32>
    %112 = vector.extract_strided_slice %98 {offsets = [0, 256], sizes = [8, 128], strides = [1, 1]} : vector<8x384xf32> to vector<8x128xf32>
    %113 = vector.extract_strided_slice %101 {offsets = [0, 256], sizes = [8, 128], strides = [1, 1]} : vector<8x384xf32> to vector<8x128xf32>
    %114 = arith.addf %113, %5 : vector<8x128xf32>
    %115 = arith.mulf %110, %114 : vector<8x128xf32>
    %116 = arith.addf %112, %115 : vector<8x128xf32>
    %117 = math.tanh %116 : vector<8x128xf32>
    %cst_34 = arith.constant 1.000000e+00 : f32
    %118 = vector.broadcast %cst_34 : f32 to vector<8x128xf32>
    %119 = arith.subf %118, %111 : vector<8x128xf32>
    %120 = arith.mulf %119, %117 : vector<8x128xf32>
    %121 = arith.mulf %111, %93 : vector<8x128xf32>
    %122 = arith.addf %120, %121 : vector<8x128xf32>
    %c4_i32 = arith.constant 4 : i32
    %c8_i32_35 = arith.constant 8 : i32
    %123 = arith.muli %c4_i32, %c8_i32_35 : i32
    %124 = tpu.assume_multiple %123, 8 : i32
    %c0_36 = arith.constant 0 : index
    %125 = arith.index_cast %124 : i32 to index
    %c0_37 = arith.constant 0 : index
    %126 = vector.load %arg2[%c0_36, %125, %c0_37] : memref<1x64x384xf32, #tpu.memory_space<vmem>>, vector<1x8x384xf32>
    %127 = vector.shape_cast %126 : vector<1x8x384xf32> to vector<8x384xf32>
    %128 = arith.truncf %122 : vector<8x128xf32> to vector<8x128xbf16>
    %c0_38 = arith.constant 0 : index
    %c0_39 = arith.constant 0 : index
    %129 = vector.load %arg6[%c0_38, %c0_39] : memref<128x384xbf16, #tpu.memory_space<vmem>>, vector<128x384xbf16>
    %cst_40 = arith.constant dense<0.000000e+00> : vector<8x384xf32>
    %130 = tpu.matmul %128, %129, %cst_40 {dimension_numbers = #tpu.dot_dimension_numbers<[1], [0], [0], [1], [0, 0, 1, 1], [], []>} : vector<8x128xbf16>, vector<128x384xbf16>, vector<8x384xf32> -> vector<8x384xf32>
    %131 = vector.extract_strided_slice %127 {offsets = [0, 0], sizes = [8, 256], strides = [1, 1]} : vector<8x384xf32> to vector<8x256xf32>
    %132 = vector.extract_strided_slice %130 {offsets = [0, 0], sizes = [8, 256], strides = [1, 1]} : vector<8x384xf32> to vector<8x256xf32>
    %133 = arith.addf %131, %132 : vector<8x256xf32>
    %134 = arith.negf %133 : vector<8x256xf32>
    %135 = math.exp %134 : vector<8x256xf32>
    %cst_41 = arith.constant 1.000000e+00 : f32
    %136 = vector.broadcast %cst_41 : f32 to vector<8x256xf32>
    %137 = arith.addf %136, %135 : vector<8x256xf32>
    %138 = arith.divf %136, %137 : vector<8x256xf32>
    %139 = vector.extract_strided_slice %138 {offsets = [0, 0], sizes = [8, 128], strides = [1, 1]} : vector<8x256xf32> to vector<8x128xf32>
    %140 = vector.extract_strided_slice %138 {offsets = [0, 128], sizes = [8, 128], strides = [1, 1]} : vector<8x256xf32> to vector<8x128xf32>
    %141 = vector.extract_strided_slice %127 {offsets = [0, 256], sizes = [8, 128], strides = [1, 1]} : vector<8x384xf32> to vector<8x128xf32>
    %142 = vector.extract_strided_slice %130 {offsets = [0, 256], sizes = [8, 128], strides = [1, 1]} : vector<8x384xf32> to vector<8x128xf32>
    %143 = arith.addf %142, %5 : vector<8x128xf32>
    %144 = arith.mulf %139, %143 : vector<8x128xf32>
    %145 = arith.addf %141, %144 : vector<8x128xf32>
    %146 = math.tanh %145 : vector<8x128xf32>
    %cst_42 = arith.constant 1.000000e+00 : f32
    %147 = vector.broadcast %cst_42 : f32 to vector<8x128xf32>
    %148 = arith.subf %147, %140 : vector<8x128xf32>
    %149 = arith.mulf %148, %146 : vector<8x128xf32>
    %150 = arith.mulf %140, %122 : vector<8x128xf32>
    %151 = arith.addf %149, %150 : vector<8x128xf32>
    %c5_i32 = arith.constant 5 : i32
    %c8_i32_43 = arith.constant 8 : i32
    %152 = arith.muli %c5_i32, %c8_i32_43 : i32
    %153 = tpu.assume_multiple %152, 8 : i32
    %c0_44 = arith.constant 0 : index
    %154 = arith.index_cast %153 : i32 to index
    %c0_45 = arith.constant 0 : index
    %155 = vector.load %arg2[%c0_44, %154, %c0_45] : memref<1x64x384xf32, #tpu.memory_space<vmem>>, vector<1x8x384xf32>
    %156 = vector.shape_cast %155 : vector<1x8x384xf32> to vector<8x384xf32>
    %157 = arith.truncf %151 : vector<8x128xf32> to vector<8x128xbf16>
    %c0_46 = arith.constant 0 : index
    %c0_47 = arith.constant 0 : index
    %158 = vector.load %arg6[%c0_46, %c0_47] : memref<128x384xbf16, #tpu.memory_space<vmem>>, vector<128x384xbf16>
    %cst_48 = arith.constant dense<0.000000e+00> : vector<8x384xf32>
    %159 = tpu.matmul %157, %158, %cst_48 {dimension_numbers = #tpu.dot_dimension_numbers<[1], [0], [0], [1], [0, 0, 1, 1], [], []>} : vector<8x128xbf16>, vector<128x384xbf16>, vector<8x384xf32> -> vector<8x384xf32>
    %160 = vector.extract_strided_slice %156 {offsets = [0, 0], sizes = [8, 256], strides = [1, 1]} : vector<8x384xf32> to vector<8x256xf32>
    %161 = vector.extract_strided_slice %159 {offsets = [0, 0], sizes = [8, 256], strides = [1, 1]} : vector<8x384xf32> to vector<8x256xf32>
    %162 = arith.addf %160, %161 : vector<8x256xf32>
    %163 = arith.negf %162 : vector<8x256xf32>
    %164 = math.exp %163 : vector<8x256xf32>
    %cst_49 = arith.constant 1.000000e+00 : f32
    %165 = vector.broadcast %cst_49 : f32 to vector<8x256xf32>
    %166 = arith.addf %165, %164 : vector<8x256xf32>
    %167 = arith.divf %165, %166 : vector<8x256xf32>
    %168 = vector.extract_strided_slice %167 {offsets = [0, 0], sizes = [8, 128], strides = [1, 1]} : vector<8x256xf32> to vector<8x128xf32>
    %169 = vector.extract_strided_slice %167 {offsets = [0, 128], sizes = [8, 128], strides = [1, 1]} : vector<8x256xf32> to vector<8x128xf32>
    %170 = vector.extract_strided_slice %156 {offsets = [0, 256], sizes = [8, 128], strides = [1, 1]} : vector<8x384xf32> to vector<8x128xf32>
    %171 = vector.extract_strided_slice %159 {offsets = [0, 256], sizes = [8, 128], strides = [1, 1]} : vector<8x384xf32> to vector<8x128xf32>
    %172 = arith.addf %171, %5 : vector<8x128xf32>
    %173 = arith.mulf %168, %172 : vector<8x128xf32>
    %174 = arith.addf %170, %173 : vector<8x128xf32>
    %175 = math.tanh %174 : vector<8x128xf32>
    %cst_50 = arith.constant 1.000000e+00 : f32
    %176 = vector.broadcast %cst_50 : f32 to vector<8x128xf32>
    %177 = arith.subf %176, %169 : vector<8x128xf32>
    %178 = arith.mulf %177, %175 : vector<8x128xf32>
    %179 = arith.mulf %169, %151 : vector<8x128xf32>
    %180 = arith.addf %178, %179 : vector<8x128xf32>
    %c6_i32 = arith.constant 6 : i32
    %c8_i32_51 = arith.constant 8 : i32
    %181 = arith.muli %c6_i32, %c8_i32_51 : i32
    %182 = tpu.assume_multiple %181, 8 : i32
    %c0_52 = arith.constant 0 : index
    %183 = arith.index_cast %182 : i32 to index
    %c0_53 = arith.constant 0 : index
    %184 = vector.load %arg2[%c0_52, %183, %c0_53] : memref<1x64x384xf32, #tpu.memory_space<vmem>>, vector<1x8x384xf32>
    %185 = vector.shape_cast %184 : vector<1x8x384xf32> to vector<8x384xf32>
    %186 = arith.truncf %180 : vector<8x128xf32> to vector<8x128xbf16>
    %c0_54 = arith.constant 0 : index
    %c0_55 = arith.constant 0 : index
    %187 = vector.load %arg6[%c0_54, %c0_55] : memref<128x384xbf16, #tpu.memory_space<vmem>>, vector<128x384xbf16>
    %cst_56 = arith.constant dense<0.000000e+00> : vector<8x384xf32>
    %188 = tpu.matmul %186, %187, %cst_56 {dimension_numbers = #tpu.dot_dimension_numbers<[1], [0], [0], [1], [0, 0, 1, 1], [], []>} : vector<8x128xbf16>, vector<128x384xbf16>, vector<8x384xf32> -> vector<8x384xf32>
    %189 = vector.extract_strided_slice %185 {offsets = [0, 0], sizes = [8, 256], strides = [1, 1]} : vector<8x384xf32> to vector<8x256xf32>
    %190 = vector.extract_strided_slice %188 {offsets = [0, 0], sizes = [8, 256], strides = [1, 1]} : vector<8x384xf32> to vector<8x256xf32>
    %191 = arith.addf %189, %190 : vector<8x256xf32>
    %192 = arith.negf %191 : vector<8x256xf32>
    %193 = math.exp %192 : vector<8x256xf32>
    %cst_57 = arith.constant 1.000000e+00 : f32
    %194 = vector.broadcast %cst_57 : f32 to vector<8x256xf32>
    %195 = arith.addf %194, %193 : vector<8x256xf32>
    %196 = arith.divf %194, %195 : vector<8x256xf32>
    %197 = vector.extract_strided_slice %196 {offsets = [0, 0], sizes = [8, 128], strides = [1, 1]} : vector<8x256xf32> to vector<8x128xf32>
    %198 = vector.extract_strided_slice %196 {offsets = [0, 128], sizes = [8, 128], strides = [1, 1]} : vector<8x256xf32> to vector<8x128xf32>
    %199 = vector.extract_strided_slice %185 {offsets = [0, 256], sizes = [8, 128], strides = [1, 1]} : vector<8x384xf32> to vector<8x128xf32>
    %200 = vector.extract_strided_slice %188 {offsets = [0, 256], sizes = [8, 128], strides = [1, 1]} : vector<8x384xf32> to vector<8x128xf32>
    %201 = arith.addf %200, %5 : vector<8x128xf32>
    %202 = arith.mulf %197, %201 : vector<8x128xf32>
    %203 = arith.addf %199, %202 : vector<8x128xf32>
    %204 = math.tanh %203 : vector<8x128xf32>
    %cst_58 = arith.constant 1.000000e+00 : f32
    %205 = vector.broadcast %cst_58 : f32 to vector<8x128xf32>
    %206 = arith.subf %205, %198 : vector<8x128xf32>
    %207 = arith.mulf %206, %204 : vector<8x128xf32>
    %208 = arith.mulf %198, %180 : vector<8x128xf32>
    %209 = arith.addf %207, %208 : vector<8x128xf32>
    %c7_i32 = arith.constant 7 : i32
    %c8_i32_59 = arith.constant 8 : i32
    %210 = arith.muli %c7_i32, %c8_i32_59 : i32
    %211 = tpu.assume_multiple %210, 8 : i32
    %c0_60 = arith.constant 0 : index
    %212 = arith.index_cast %211 : i32 to index
    %c0_61 = arith.constant 0 : index
    %213 = vector.load %arg2[%c0_60, %212, %c0_61] : memref<1x64x384xf32, #tpu.memory_space<vmem>>, vector<1x8x384xf32>
    %214 = vector.shape_cast %213 : vector<1x8x384xf32> to vector<8x384xf32>
    %215 = arith.truncf %209 : vector<8x128xf32> to vector<8x128xbf16>
    %c0_62 = arith.constant 0 : index
    %c0_63 = arith.constant 0 : index
    %216 = vector.load %arg6[%c0_62, %c0_63] : memref<128x384xbf16, #tpu.memory_space<vmem>>, vector<128x384xbf16>
    %cst_64 = arith.constant dense<0.000000e+00> : vector<8x384xf32>
    %217 = tpu.matmul %215, %216, %cst_64 {dimension_numbers = #tpu.dot_dimension_numbers<[1], [0], [0], [1], [0, 0, 1, 1], [], []>} : vector<8x128xbf16>, vector<128x384xbf16>, vector<8x384xf32> -> vector<8x384xf32>
    %218 = vector.extract_strided_slice %214 {offsets = [0, 0], sizes = [8, 256], strides = [1, 1]} : vector<8x384xf32> to vector<8x256xf32>
    %219 = vector.extract_strided_slice %217 {offsets = [0, 0], sizes = [8, 256], strides = [1, 1]} : vector<8x384xf32> to vector<8x256xf32>
    %220 = arith.addf %218, %219 : vector<8x256xf32>
    %221 = arith.negf %220 : vector<8x256xf32>
    %222 = math.exp %221 : vector<8x256xf32>
    %cst_65 = arith.constant 1.000000e+00 : f32
    %223 = vector.broadcast %cst_65 : f32 to vector<8x256xf32>
    %224 = arith.addf %223, %222 : vector<8x256xf32>
    %225 = arith.divf %223, %224 : vector<8x256xf32>
    %226 = vector.extract_strided_slice %225 {offsets = [0, 0], sizes = [8, 128], strides = [1, 1]} : vector<8x256xf32> to vector<8x128xf32>
    %227 = vector.extract_strided_slice %225 {offsets = [0, 128], sizes = [8, 128], strides = [1, 1]} : vector<8x256xf32> to vector<8x128xf32>
    %228 = vector.extract_strided_slice %214 {offsets = [0, 256], sizes = [8, 128], strides = [1, 1]} : vector<8x384xf32> to vector<8x128xf32>
    %229 = vector.extract_strided_slice %217 {offsets = [0, 256], sizes = [8, 128], strides = [1, 1]} : vector<8x384xf32> to vector<8x128xf32>
    %230 = arith.addf %229, %5 : vector<8x128xf32>
    %231 = arith.mulf %226, %230 : vector<8x128xf32>
    %232 = arith.addf %228, %231 : vector<8x128xf32>
    %233 = math.tanh %232 : vector<8x128xf32>
    %cst_66 = arith.constant 1.000000e+00 : f32
    %234 = vector.broadcast %cst_66 : f32 to vector<8x128xf32>
    %235 = arith.subf %234, %227 : vector<8x128xf32>
    %236 = arith.mulf %235, %233 : vector<8x128xf32>
    %237 = arith.mulf %227, %209 : vector<8x128xf32>
    %238 = arith.addf %236, %237 : vector<8x128xf32>
    %c8_i32_67 = arith.constant 8 : i32
    %c0_68 = arith.constant 0 : index
    %c0_69 = arith.constant 0 : index
    %239 = vector.load %arg7[%c0_68, %c0_69] : memref<8x128xf32, #tpu.memory_space<vmem>>, vector<8x128xf32>
    tpu.vector_store %arg7[%c0_68, %c0_69], %238 {strides = array<i32>} : memref<8x128xf32, #tpu.memory_space<vmem>>, vector<8x128xf32>,
    %c0_70 = arith.constant 0 : index
    %c0_71 = arith.constant 0 : index
    %240 = vector.load %arg5[%c0_70, %c0_71] : memref<8x128xf32, #tpu.memory_space<vmem>>, vector<8x128xf32>
    tpu.vector_store %arg5[%c0_70, %c0_71], %238 {strides = array<i32>} : memref<8x128xf32, #tpu.memory_space<vmem>>, vector<8x128xf32>,
    return
  }
  func.func @transform_0(%arg0: i32, %arg1: i32) -> (i32, i32, i32) {
    %c0_i32 = arith.constant 0 : i32
    %c0_i32_0 = arith.constant 0 : i32
    return %arg0, %arg1, %c0_i32 : i32, i32, i32
  }
  func.func @transform_2(%arg0: i32, %arg1: i32) -> (i32, i32) {
    %c0_i32 = arith.constant 0 : i32
    %c0_i32_0 = arith.constant 0 : i32
    %c0_i32_1 = arith.constant 0 : i32
    return %c0_i32, %c0_i32_0 : i32, i32
  }
  func.func @transform_3(%arg0: i32, %arg1: i32) -> (i32, i32) {
    %c0_i32 = arith.constant 0 : i32
    %c0_i32_0 = arith.constant 0 : i32
    return %arg0, %c0_i32 : i32, i32
  }
}

</mosaic_0001>

<llo_original>
// kernel: tpu_custom_call.1
$region0: #{tpu_custom_call.1}
  #allocation0 [shape = 'u32[]', space=smem, size = 0x4, offset = 0x4, fixed_abs, tag = 'smem constant byte address 0x4 - core index']
  #allocation1 [shape = 'u32[144,128]{1,0:T(1,128)}', space=vmem, size = 0x12000, scoped, tag = 'internal scratch']
  #allocation2 [shape = 'bf16[128,384]{1,0:T(16,128)(2,1)}', space=vmem, size = 0x18000, scoped, tag = 'scratch operand']
  #allocation3 [shape = 'f32[8,128]{1,0:T(8,128)}', space=vmem, size = 0x1000, scoped, tag = 'scratch operand']
  #allocation4 [shape = 's32[1]{0}', space=sflag, size = 0x4, scoped, tag = 'scratch operand']
  #allocation9 [shape = 's32[]', space=sflag, size = 0x4, offset = 0, fixed_abs, tag = 'sflag constant byte address 0x0 - dummy sync flag']
  %s0 = inlined_call_operand.hbm [shape: f32[1,64,384], index: 0, kind: input, shape index: {}]
  %s1 = inlined_call_operand.hbm [shape: bf16[128,384], index: 1, kind: input, shape index: {}]
  %s2 = inlined_call_operand.vmem [shape: f32[1,128], index: 2, kind: input, shape index: {}]
  %s3 = inlined_call_operand.hbm [shape: f32[8,128], index: 3, kind: output, shape index: {}]
  %s4 = sld [smem:[#allocation0]]
  $region26: #{tpu_custom_call.1} parent=0
    _
  %s6 = ssub.s32 1, %s4
  %s7 = scalar_select 0, %s6, %s4
  $region1: #{tpu_custom_call.1} parent=0
    #allocation5 [shape = 'u8[98304]{0}', space=vmem, size = 0x18000, scoped, tag = 'input window, operand 0, single buffered']
    #allocation6 [shape = 's32[1]{0}', space=sflag, size = 0x4, scoped, tag = 'scoped memory for tpu_custom_call.1']
    #allocation7 [shape = 's32[1]{0}', space=sflag, size = 0x4, scoped, tag = 'scoped memory for tpu_custom_call.1']
    #allocation8 [shape = 'u8[4096]{0}', space=vmem, size = 0x1000, scoped, tag = 'output window, operand 0, single buffered']
    %8 = vsyncpa [#allocation6], 0
    %9 = vsyncpa [#allocation7], 0
    // Predicated region
    $region2: #{tpu_custom_call.1} parent=1 // pred_check
      _
    $region3: #{tpu_custom_call.1} parent=1 // pred_check_branch
      %11 = sbr.rel (0) target = $region5
    $region4: #{tpu_custom_call.1} parent=1 // pred_region
      %s13 = ssub.s32 3072, 3072
      %14 = vsyncadd [#allocation6], %s13
      %s15 = sshll.u32 [#allocation5], 4
      %s16 = int_to_ptr.vmem [resolvable:$true] %s15
      %21 = dma.hbm_to_vmem [thread:$0]  %s0, 3072, %s16, [#allocation6], 384, 384, 24
    $region5: #{tpu_custom_call.1} parent=1 // pred_fallthru
      _
    // Predicated region
    $region6: #{tpu_custom_call.1} parent=1 // pred_check
      _
    $region7: #{tpu_custom_call.1} parent=1 // pred_check_branch
      %23 = sbr.rel (0) target = $region9
    $region8: #{tpu_custom_call.1} parent=1 // pred_region
      _
    $region9: #{tpu_custom_call.1} parent=1 // pred_fallthru
      _
    // Predicated region
    $region10: #{tpu_custom_call.1} parent=1 // pred_check
      _
    $region11: #{tpu_custom_call.1} parent=1 // pred_check_branch
      %25 = sbr.rel (0) target = $region13
    $region12: #{tpu_custom_call.1} parent=1 // pred_region
      %26 = dma.done [#allocation6], 3072
    $region13: #{tpu_custom_call.1} parent=1 // pred_fallthru
      _
    %p28 = scmp.eq.s32.totalorder 0, 0
    // Predicated region
    $region14: #{tpu_custom_call.1} parent=1 // pred_check
      %p29 = pneg %p28
    $region15: #{tpu_custom_call.1} parent=1 // pred_check_branch
      %31 = sbr.rel (%p29) target = $region17
    $region16: #{tpu_custom_call.1} parent=1 // pred_region
      #allocation10 [shape = 'u32[9]{0}', space=smem, size = 0x24, scoped, tag = 'DMA stride descriptor']
      %s33 = sshll.u32 1, 14
      %s34 = sxor.u32 4294967295, %s33
      %s36 = sld [smem:[#allocation0]]
      %s37 = sadd.s32 2, %s36
      %s39 = sshll.u32 7, 26
      %s40 = sxor.u32 4294967295, %s39
      %s41 = sand.u32 0, %s40
      %s42 = sshll.u32 %s37, 26
      %s43 = sor.u32 %s41, %s42
      %s44 = sshll.u32 [#allocation2], 4
      %s45 = int_to_ptr.vmem [resolvable:$true] %s44
      %48 = sst [smem:[#allocation10]] 384
      %s49 = scalar_lea.smem [#allocation10], 1
      %50 = sst [smem:[%s49]] 384
      %s51 = scalar_lea.smem [#allocation10], 2
      %52 = sst [smem:[%s51]] 3
      %s53 = scalar_lea.smem [#allocation10], 3
      %54 = sst [smem:[%s53]] 64
      %s55 = scalar_lea.smem [#allocation10], 4
      %56 = sst [smem:[%s55]] 128
      %s57 = scalar_lea.smem [#allocation10], 5
      %58 = sst [smem:[%s57]] 2
      %s59 = scalar_lea.smem [#allocation10], 6
      %60 = sst [smem:[%s59]] 192
      %s61 = scalar_lea.smem [#allocation10], 7
      %62 = sst [smem:[%s61]] 64
      %s63 = scalar_lea.smem [#allocation10], 8
      %64 = sst [smem:[%s63]] 4
      %66 = dma.general %s1, 3072, %s45, [#allocation4], [#allocation9], [#allocation10], %s43, 0
      %s67 = smul.u32 4, 16
      %s68 = smul.u32 %s67, 3
      %s69 = sshll.u32 %s68, 4
      %70 = dma.done [#allocation4], %s69
      %71 = vst [vmem:[#allocation3] sm:$0xff] 0.0
    $region17: #{tpu_custom_call.1} parent=1 // pred_fallthru
      _
    %v72 = vld [vmem:[%s2] sm:$0x1]
    %v74 = vlaneseq
    %v75 = vshrl.u32 %v74, 7
    %v76 = vsub.s32 0, %v75
    %v77 = vrot.slane %v72, %v76
    %v79 = vld [vmem:[#allocation3] sm:$0xff]
    %s80 = smul.u32 0, 3
    %s81 = smul.addr %s80, 8
    %s82 = scalar_lea.vmem [#allocation5], %s81
    %v83 = vld [vmem:[%s82] sm:$0xff]
    %v84 = vld [vmem:[%s82 + $0x8] sm:$0xff]
    %v85 = vld [vmem:[%s82 + $0x10] sm:$0xff]
    %v86 = vpack.c.bf16 %v79, %v79
    %v87 = vld [vmem:[#allocation2] sm:$0xff]
    %v88 = vld [vmem:[#allocation2 + $0x8] sm:$0xff]
    %v89 = vld [vmem:[#allocation2 + $0x10] sm:$0xff]
    %v90 = vld [vmem:[#allocation2 + $0x18] sm:$0xff]
    %v91 = vld [vmem:[#allocation2 + $0x20] sm:$0xff]
    %v92 = vld [vmem:[#allocation2 + $0x28] sm:$0xff]
    %v93 = vld [vmem:[#allocation2 + $0x30] sm:$0xff]
    %v94 = vld [vmem:[#allocation2 + $0x38] sm:$0xff]
    %v95 = vld [vmem:[#allocation2 + $0x40] sm:$0xff]
    %v96 = vld [vmem:[#allocation2 + $0x48] sm:$0xff]
    %v97 = vld [vmem:[#allocation2 + $0x50] sm:$0xff]
    %v98 = vld [vmem:[#allocation2 + $0x58] sm:$0xff]
    %v99 = vld [vmem:[#allocation2 + $0x60] sm:$0xff]
    %v100 = vld [vmem:[#allocation2 + $0x68] sm:$0xff]
    %v101 = vld [vmem:[#allocation2 + $0x70] sm:$0xff]
    %v102 = vld [vmem:[#allocation2 + $0x78] sm:$0xff]
    %v103 = vld [vmem:[#allocation2 + $0x80] sm:$0xff]
    %v104 = vld [vmem:[#allocation2 + $0x88] sm:$0xff]
    %v105 = vld [vmem:[#allocation2 + $0x90] sm:$0xff]
    %v106 = vld [vmem:[#allocation2 + $0x98] sm:$0xff]
    %v107 = vld [vmem:[#allocation2 + $0xa0] sm:$0xff]
    %v108 = vld [vmem:[#allocation2 + $0xa8] sm:$0xff]
    %v109 = vld [vmem:[#allocation2 + $0xb0] sm:$0xff]
    %v110 = vld [vmem:[#allocation2 + $0xb8] sm:$0xff]
    %111 = vmatprep.subr.bf16.mxu0 %v88
    %112 = vmatpush1.bf16.msra.mxu0 %v87
    %113 = vmatprep.subr.bf16.mxu0 %v91
    %114 = vmatpush1.bf16.msra.mxu0 %v90
    %115 = vmatprep.subr.bf16.mxu0 %v94
    %116 = vmatpush1.bf16.msra.mxu0 %v93
    %117 = vmatprep.subr.bf16.mxu0 %v97
    %118 = vmatpush1.bf16.msra.mxu0 %v96
    %119 = vmatprep.subr.bf16.mxu0 %v100
    %120 = vmatpush1.bf16.msra.mxu0 %v99
    %121 = vmatprep.subr.bf16.mxu0 %v103
    %122 = vmatpush1.bf16.msra.mxu0 %v102
    %123 = vmatprep.subr.bf16.mxu0 %v106
    %124 = vmatpush1.bf16.msra.mxu0 %v105
    %125 = vmatprep.subr.bf16.mxu0 %v109
    %126 = vmatpush1.bf16.msra.mxu0 %v108
    %127 = vmatprep.subr.bf16.mxu0 0
    %128 = vmatpush1.bf16.msra.mxu0 0
    %129 = vmatprep.subr.bf16.mxu0 0
    %130 = vmatpush1.bf16.msra.mxu0 0
    %131 = vmatprep.subr.bf16.mxu0 0
    %132 = vmatpush1.bf16.msra.mxu0 0
    %133 = vmatprep.subr.bf16.mxu0 0
    %134 = vmatpush1.bf16.msra.mxu0 0
    %135 = vmatprep.subr.bf16.mxu0 0
    %136 = vmatpush1.bf16.msra.mxu0 0
    %137 = vmatprep.subr.bf16.mxu0 0
    %138 = vmatpush1.bf16.msra.mxu0 0
    %139 = vmatprep.subr.bf16.mxu0 0
    %140 = vmatpush1.bf16.msra.mxu0 0
    %141 = vmatprep.subr.bf16.mxu0 0
    %142 = vmatpush1.bf16.msra.mxu0 0
    %143 = vmatprep.mubr.bf16.mxu0 0
    %144 = vmatmul.mubr.bf16.gmra.mrb[0].mxu0 %v86
    %v145 = vpop.f32.mrb[0].mxu0
    %v146 = vadd.f32 0.0, %v145
    %v147 = vpop.f32.mrb[0].mxu0
    %v148 = vadd.f32 0.0, %v147
    %v149 = vpop.f32.mrb[0].mxu0
    %v150 = vpop.f32.mrb[0].mxu0
    %151 = vdwg.mxu0
    %152 = vmatprep.subr.bf16.mxu0 0
    %153 = vmatpush1.bf16.msra.mxu0 %v89
    %154 = vmatprep.subr.bf16.mxu0 0
    %155 = vmatpush1.bf16.msra.mxu0 %v92
    %156 = vmatprep.subr.bf16.mxu0 0
    %157 = vmatpush1.bf16.msra.mxu0 %v95
    %158 = vmatprep.subr.bf16.mxu0 0
    %159 = vmatpush1.bf16.msra.mxu0 %v98
    %160 = vmatprep.subr.bf16.mxu0 0
    %161 = vmatpush1.bf16.msra.mxu0 %v101
    %162 = vmatprep.subr.bf16.mxu0 0
    %163 = vmatpush1.bf16.msra.mxu0 %v104
    %164 = vmatprep.subr.bf16.mxu0 0
    %165 = vmatpush1.bf16.msra.mxu0 %v107
    %166 = vmatprep.subr.bf16.mxu0 0
    %167 = vmatpush1.bf16.msra.mxu0 %v110
    %168 = vmatprep.subr.bf16.mxu0 0
    %169 = vmatpush1.bf16.msra.mxu0 0
    %170 = vmatprep.subr.bf16.mxu0 0
    %171 = vmatpush1.bf16.msra.mxu0 0
    %172 = vmatprep.subr.bf16.mxu0 0
    %173 = vmatpush1.bf16.msra.mxu0 0
    %174 = vmatprep.subr.bf16.mxu0 0
    %175 = vmatpush1.bf16.msra.mxu0 0
    %176 = vmatprep.subr.bf16.mxu0 0
    %177 = vmatpush1.bf16.msra.mxu0 0
    %178 = vmatprep.subr.bf16.mxu0 0
    %179 = vmatpush1.bf16.msra.mxu0 0
    %180 = vmatprep.subr.bf16.mxu0 0
    %181 = vmatpush1.bf16.msra.mxu0 0
    %182 = vmatprep.subr.bf16.mxu0 0
    %183 = vmatpush1.bf16.msra.mxu0 0
    %184 = vmatprep.mubr.bf16.mxu0 0
    %185 = vmatmul.mubr.bf16.gmra.mrb[0].mxu0 %v86
    %v186 = vpop.f32.mrb[0].mxu0
    %v187 = vadd.f32 0.0, %v186
    %v188 = vpop.f32.mrb[0].mxu0
    %v189 = vpop.f32.mrb[0].mxu0
    %v190 = vpop.f32.mrb[0].mxu0
    %191 = vdwg.mxu0
    %v192 = vadd.f32 %v83, %v146
    %v193 = vadd.f32 %v84, %v148
    %v194 = vxor.u32 %v192, 2147483648
    %v195 = vxor.u32 %v193, 2147483648
    %v196 = vmul.f32 %v194, 1.442695
    %v197 = vpow.pop %v196
    %v198 = vmul.f32 %v195, 1.442695
    %v199 = vpow.pop %v198
    %v200 = vadd.f32 %v197, 1.0
    %v201 = vadd.f32 %v199, 1.0
    %v202 = vrcp.pop %v200
    %v203 = vmul.f32 1.0, %v202
    %v204 = vrcp.pop %v201
    %v205 = vmul.f32 1.0, %v204
    %v206 = vadd.f32 %v187, %v77
    %v207 = vmul.f32 %v203, %v206
    %v208 = vadd.f32 %v85, %v207
    %v209 = vtanh.pop %v208
    %v210 = vsub.f32 1.0, %v205
    %v211 = vmul.f32 %v210, %v209
    %v212 = vmul.f32 %v205, %v79
    %v213 = vadd.f32 %v211, %v212
    %s214 = smul.u32 1, 3
    %s215 = smul.addr %s214, 8
    %s216 = scalar_lea.vmem [#allocation5], %s215
    %v217 = vld [vmem:[%s216] sm:$0xff]
    %v218 = vld [vmem:[%s216 + $0x8] sm:$0xff]
    %v219 = vld [vmem:[%s216 + $0x10] sm:$0xff]
    %v220 = vpack.c.bf16 %v213, %v213
    %221 = vmatprep.subr.bf16.mxu0 %v88
    %222 = vmatpush1.bf16.msra.mxu0 %v87
    %223 = vmatprep.subr.bf16.mxu0 %v91
    %224 = vmatpush1.bf16.msra.mxu0 %v90
    %225 = vmatprep.subr.bf16.mxu0 %v94
    %226 = vmatpush1.bf16.msra.mxu0 %v93
    %227 = vmatprep.subr.bf16.mxu0 %v97
    %228 = vmatpush1.bf16.msra.mxu0 %v96
    %229 = vmatprep.subr.bf16.mxu0 %v100
    %230 = vmatpush1.bf16.msra.mxu0 %v99
    %231 = vmatprep.subr.bf16.mxu0 %v103
    %232 = vmatpush1.bf16.msra.mxu0 %v102
    %233 = vmatprep.subr.bf16.mxu0 %v106
    %234 = vmatpush1.bf16.msra.mxu0 %v105
    %235 = vmatprep.subr.bf16.mxu0 %v109
    %236 = vmatpush1.bf16.msra.mxu0 %v108
    %237 = vmatprep.subr.bf16.mxu0 0
    %238 = vmatpush1.bf16.msra.mxu0 0
    %239 = vmatprep.subr.bf16.mxu0 0
    %240 = vmatpush1.bf16.msra.mxu0 0
    %241 = vmatprep.subr.bf16.mxu0 0
    %242 = vmatpush1.bf16.msra.mxu0 0
    %243 = vmatprep.subr.bf16.mxu0 0
    %244 = vmatpush1.bf16.msra.mxu0 0
    %245 = vmatprep.subr.bf16.mxu0 0
    %246 = vmatpush1.bf16.msra.mxu0 0
    %247 = vmatprep.subr.bf16.mxu0 0
    %248 = vmatpush1.bf16.msra.mxu0 0
    %249 = vmatprep.subr.bf16.mxu0 0
    %250 = vmatpush1.bf16.msra.mxu0 0
    %251 = vmatprep.subr.bf16.mxu0 0
    %252 = vmatpush1.bf16.msra.mxu0 0
    %253 = vmatprep.mubr.bf16.mxu0 0
    %254 = vmatmul.mubr.bf16.gmra.mrb[0].mxu0 %v220
    %v255 = vpop.f32.mrb[0].mxu0
    %v256 = vadd.f32 0.0, %v255
    %v257 = vpop.f32.mrb[0].mxu0
    %v258 = vadd.f32 0.0, %v257
    %v259 = vpop.f32.mrb[0].mxu0
    %v260 = vpop.f32.mrb[0].mxu0
    %261 = vdwg.mxu0
    %262 = vmatprep.subr.bf16.mxu0 0
    %263 = vmatpush1.bf16.msra.mxu0 %v89
    %264 = vmatprep.subr.bf16.mxu0 0
    %265 = vmatpush1.bf16.msra.mxu0 %v92
    %266 = vmatprep.subr.bf16.mxu0 0
    %267 = vmatpush1.bf16.msra.mxu0 %v95
    %268 = vmatprep.subr.bf16.mxu0 0
    %269 = vmatpush1.bf16.msra.mxu0 %v98
    %270 = vmatprep.subr.bf16.mxu0 0
    %271 = vmatpush1.bf16.msra.mxu0 %v101
    %272 = vmatprep.subr.bf16.mxu0 0
    %273 = vmatpush1.bf16.msra.mxu0 %v104
    %274 = vmatprep.subr.bf16.mxu0 0
    %275 = vmatpush1.bf16.msra.mxu0 %v107
    %276 = vmatprep.subr.bf16.mxu0 0
    %277 = vmatpush1.bf16.msra.mxu0 %v110
    %278 = vmatprep.subr.bf16.mxu0 0
    %279 = vmatpush1.bf16.msra.mxu0 0
    %280 = vmatprep.subr.bf16.mxu0 0
    %281 = vmatpush1.bf16.msra.mxu0 0
    %282 = vmatprep.subr.bf16.mxu0 0
    %283 = vmatpush1.bf16.msra.mxu0 0
    %284 = vmatprep.subr.bf16.mxu0 0
    %285 = vmatpush1.bf16.msra.mxu0 0
    %286 = vmatprep.subr.bf16.mxu0 0
    %287 = vmatpush1.bf16.msra.mxu0 0
    %288 = vmatprep.subr.bf16.mxu0 0
    %289 = vmatpush1.bf16.msra.mxu0 0
    %290 = vmatprep.subr.bf16.mxu0 0
    %291 = vmatpush1.bf16.msra.mxu0 0
    %292 = vmatprep.subr.bf16.mxu0 0
    %293 = vmatpush1.bf16.msra.mxu0 0
    %294 = vmatprep.mubr.bf16.mxu0 0
    %295 = vmatmul.mubr.bf16.gmra.mrb[0].mxu0 %v220
    %v296 = vpop.f32.mrb[0].mxu0
    %v297 = vadd.f32 0.0, %v296
    %v298 = vpop.f32.mrb[0].mxu0
    %v299 = vpop.f32.mrb[0].mxu0
    %v300 = vpop.f32.mrb[0].mxu0
    %301 = vdwg.mxu0
    %v302 = vadd.f32 %v217, %v256
    %v303 = vadd.f32 %v218, %v258
    %v304 = vxor.u32 %v302, 2147483648
    %v305 = vxor.u32 %v303, 2147483648
    %v306 = vmul.f32 %v304, 1.442695
    %v307 = vpow.pop %v306
    %v308 = vmul.f32 %v305, 1.442695
    %v309 = vpow.pop %v308
    %v310 = vadd.f32 %v307, 1.0
    %v311 = vadd.f32 %v309, 1.0
    %v312 = vrcp.pop %v310
    %v313 = vmul.f32 1.0, %v312
    %v314 = vrcp.pop %v311
    %v315 = vmul.f32 1.0, %v314
    %v316 = vadd.f32 %v297, %v77
    %v317 = vmul.f32 %v313, %v316
    %v318 = vadd.f32 %v219, %v317
    %v319 = vtanh.pop %v318
    %v320 = vsub.f32 1.0, %v315
    %v321 = vmul.f32 %v320, %v319
    %v322 = vmul.f32 %v315, %v213
    %v323 = vadd.f32 %v321, %v322
    %s324 = smul.u32 2, 3
    %s325 = smul.addr %s324, 8
    %s326 = scalar_lea.vmem [#allocation5], %s325
    %v327 = vld [vmem:[%s326] sm:$0xff]
    %v328 = vld [vmem:[%s326 + $0x8] sm:$0xff]
    %v329 = vld [vmem:[%s326 + $0x10] sm:$0xff]
    %v330 = vpack.c.bf16 %v323, %v323
    %331 = vmatprep.subr.bf16.mxu0 %v88
    %332 = vmatpush1.bf16.msra.mxu0 %v87
    %333 = vmatprep.subr.bf16.mxu0 %v91
    %334 = vmatpush1.bf16.msra.mxu0 %v90
    %335 = vmatprep.subr.bf16.mxu0 %v94
    %336 = vmatpush1.bf16.msra.mxu0 %v93
    %337 = vmatprep.subr.bf16.mxu0 %v97
    %338 = vmatpush1.bf16.msra.mxu0 %v96
    %339 = vmatprep.subr.bf16.mxu0 %v100
    %340 = vmatpush1.bf16.msra.mxu0 %v99
    %341 = vmatprep.subr.bf16.mxu0 %v103
    %342 = vmatpush1.bf16.msra.mxu0 %v102
    %343 = vmatprep.subr.bf16.mxu0 %v106
    %344 = vmatpush1.bf16.msra.mxu0 %v105
    %345 = vmatprep.subr.bf16.mxu0 %v109
    %346 = vmatpush1.bf16.msra.mxu0 %v108
    %347 = vmatprep.subr.bf16.mxu0 0
    %348 = vmatpush1.bf16.msra.mxu0 0
    %349 = vmatprep.subr.bf16.mxu0 0
    %350 = vmatpush1.bf16.msra.mxu0 0
    %351 = vmatprep.subr.bf16.mxu0 0
    %352 = vmatpush1.bf16.msra.mxu0 0
    %353 = vmatprep.subr.bf16.mxu0 0
    %354 = vmatpush1.bf16.msra.mxu0 0
    %355 = vmatprep.subr.bf16.mxu0 0
    %356 = vmatpush1.bf16.msra.mxu0 0
    %357 = vmatprep.subr.bf16.mxu0 0
    %358 = vmatpush1.bf16.msra.mxu0 0
    %359 = vmatprep.subr.bf16.mxu0 0
    %360 = vmatpush1.bf16.msra.mxu0 0
    %361 = vmatprep.subr.bf16.mxu0 0
    %362 = vmatpush1.bf16.msra.mxu0 0
    %363 = vmatprep.mubr.bf16.mxu0 0
    %364 = vmatmul.mubr.bf16.gmra.mrb[0].mxu0 %v330
    %v365 = vpop.f32.mrb[0].mxu0
    %v366 = vadd.f32 0.0, %v365
    %v367 = vpop.f32.mrb[0].mxu0
    %v368 = vadd.f32 0.0, %v367
    %v369 = vpop.f32.mrb[0].mxu0
    %v370 = vpop.f32.mrb[0].mxu0
    %371 = vdwg.mxu0
    %372 = vmatprep.subr.bf16.mxu0 0
    %373 = vmatpush1.bf16.msra.mxu0 %v89
    %374 = vmatprep.subr.bf16.mxu0 0
    %375 = vmatpush1.bf16.msra.mxu0 %v92
    %376 = vmatprep.subr.bf16.mxu0 0
    %377 = vmatpush1.bf16.msra.mxu0 %v95
    %378 = vmatprep.subr.bf16.mxu0 0
    %379 = vmatpush1.bf16.msra.mxu0 %v98
    %380 = vmatprep.subr.bf16.mxu0 0
    %381 = vmatpush1.bf16.msra.mxu0 %v101
    %382 = vmatprep.subr.bf16.mxu0 0
    %383 = vmatpush1.bf16.msra.mxu0 %v104
    %384 = vmatprep.subr.bf16.mxu0 0
    %385 = vmatpush1.bf16.msra.mxu0 %v107
    %386 = vmatprep.subr.bf16.mxu0 0
    %387 = vmatpush1.bf16.msra.mxu0 %v110
    %388 = vmatprep.subr.bf16.mxu0 0
    %389 = vmatpush1.bf16.msra.mxu0 0
    %390 = vmatprep.subr.bf16.mxu0 0
    %391 = vmatpush1.bf16.msra.mxu0 0
    %392 = vmatprep.subr.bf16.mxu0 0
    %393 = vmatpush1.bf16.msra.mxu0 0
    %394 = vmatprep.subr.bf16.mxu0 0
    %395 = vmatpush1.bf16.msra.mxu0 0
    %396 = vmatprep.subr.bf16.mxu0 0
    %397 = vmatpush1.bf16.msra.mxu0 0
    %398 = vmatprep.subr.bf16.mxu0 0
    %399 = vmatpush1.bf16.msra.mxu0 0
    %400 = vmatprep.subr.bf16.mxu0 0
    %401 = vmatpush1.bf16.msra.mxu0 0
    %402 = vmatprep.subr.bf16.mxu0 0
    %403 = vmatpush1.bf16.msra.mxu0 0
    %404 = vmatprep.mubr.bf16.mxu0 0
    %405 = vmatmul.mubr.bf16.gmra.mrb[0].mxu0 %v330
    %v406 = vpop.f32.mrb[0].mxu0
    %v407 = vadd.f32 0.0, %v406
    %v408 = vpop.f32.mrb[0].mxu0
    %v409 = vpop.f32.mrb[0].mxu0
    %v410 = vpop.f32.mrb[0].mxu0
    %411 = vdwg.mxu0
    %v412 = vadd.f32 %v327, %v366
    %v413 = vadd.f32 %v328, %v368
    %v414 = vxor.u32 %v412, 2147483648
    %v415 = vxor.u32 %v413, 2147483648
    %v416 = vmul.f32 %v414, 1.442695
    %v417 = vpow.pop %v416
    %v418 = vmul.f32 %v415, 1.442695
    %v419 = vpow.pop %v418
    %v420 = vadd.f32 %v417, 1.0
    %v421 = vadd.f32 %v419, 1.0
    %v422 = vrcp.pop %v420
    %v423 = vmul.f32 1.0, %v422
    %v424 = vrcp.pop %v421
    %v425 = vmul.f32 1.0, %v424
    %v426 = vadd.f32 %v407, %v77
    %v427 = vmul.f32 %v423, %v426
    %v428 = vadd.f32 %v329, %v427
    %v429 = vtanh.pop %v428
    %v430 = vsub.f32 1.0, %v425
    %v431 = vmul.f32 %v430, %v429
    %v432 = vmul.f32 %v425, %v323
    %v433 = vadd.f32 %v431, %v432
    %s434 = smul.u32 3, 3
    %s435 = smul.addr %s434, 8
    %s436 = scalar_lea.vmem [#allocation5], %s435
    %v437 = vld [vmem:[%s436] sm:$0xff]
    %v438 = vld [vmem:[%s436 + $0x8] sm:$0xff]
    %v439 = vld [vmem:[%s436 + $0x10] sm:$0xff]
    %v440 = vpack.c.bf16 %v433, %v433
    %441 = vmatprep.subr.bf16.mxu0 %v88
    %442 = vmatpush1.bf16.msra.mxu0 %v87
    %443 = vmatprep.subr.bf16.mxu0 %v91
    %444 = vmatpush1.bf16.msra.mxu0 %v90
    %445 = vmatprep.subr.bf16.mxu0 %v94
    %446 = vmatpush1.bf16.msra.mxu0 %v93
    %447 = vmatprep.subr.bf16.mxu0 %v97
    %448 = vmatpush1.bf16.msra.mxu0 %v96
    %449 = vmatprep.subr.bf16.mxu0 %v100
    %450 = vmatpush1.bf16.msra.mxu0 %v99
    %451 = vmatprep.subr.bf16.mxu0 %v103
    %452 = vmatpush1.bf16.msra.mxu0 %v102
    %453 = vmatprep.subr.bf16.mxu0 %v106
    %454 = vmatpush1.bf16.msra.mxu0 %v105
    %455 = vmatprep.subr.bf16.mxu0 %v109
    %456 = vmatpush1.bf16.msra.mxu0 %v108
    %457 = vmatprep.subr.bf16.mxu0 0
    %458 = vmatpush1.bf16.msra.mxu0 0
    %459 = vmatprep.subr.bf16.mxu0 0
    %460 = vmatpush1.bf16.msra.mxu0 0
    %461 = vmatprep.subr.bf16.mxu0 0
    %462 = vmatpush1.bf16.msra.mxu0 0
    %463 = vmatprep.subr.bf16.mxu0 0
    %464 = vmatpush1.bf16.msra.mxu0 0
    %465 = vmatprep.subr.bf16.mxu0 0
    %466 = vmatpush1.bf16.msra.mxu0 0
    %467 = vmatprep.subr.bf16.mxu0 0
    %468 = vmatpush1.bf16.msra.mxu0 0
    %469 = vmatprep.subr.bf16.mxu0 0
    %470 = vmatpush1.bf16.msra.mxu0 0
    %471 = vmatprep.subr.bf16.mxu0 0
    %472 = vmatpush1.bf16.msra.mxu0 0
    %473 = vmatprep.mubr.bf16.mxu0 0
    %474 = vmatmul.mubr.bf16.gmra.mrb[0].mxu0 %v440
    %v475 = vpop.f32.mrb[0].mxu0
    %v476 = vadd.f32 0.0, %v475
    %v477 = vpop.f32.mrb[0].mxu0
    %v478 = vadd.f32 0.0, %v477
    %v479 = vpop.f32.mrb[0].mxu0
    %v480 = vpop.f32.mrb[0].mxu0
    %481 = vdwg.mxu0
    %482 = vmatprep.subr.bf16.mxu0 0
    %483 = vmatpush1.bf16.msra.mxu0 %v89
    %484 = vmatprep.subr.bf16.mxu0 0
    %485 = vmatpush1.bf16.msra.mxu0 %v92
    %486 = vmatprep.subr.bf16.mxu0 0
    %487 = vmatpush1.bf16.msra.mxu0 %v95
    %488 = vmatprep.subr.bf16.mxu0 0
    %489 = vmatpush1.bf16.msra.mxu0 %v98
    %490 = vmatprep.subr.bf16.mxu0 0
    %491 = vmatpush1.bf16.msra.mxu0 %v101
    %492 = vmatprep.subr.bf16.mxu0 0
    %493 = vmatpush1.bf16.msra.mxu0 %v104
    %494 = vmatprep.subr.bf16.mxu0 0
    %495 = vmatpush1.bf16.msra.mxu0 %v107
    %496 = vmatprep.subr.bf16.mxu0 0
    %497 = vmatpush1.bf16.msra.mxu0 %v110
    %498 = vmatprep.subr.bf16.mxu0 0
    %499 = vmatpush1.bf16.msra.mxu0 0
    %500 = vmatprep.subr.bf16.mxu0 0
    %501 = vmatpush1.bf16.msra.mxu0 0
    %502 = vmatprep.subr.bf16.mxu0 0
    %503 = vmatpush1.bf16.msra.mxu0 0
    %504 = vmatprep.subr.bf16.mxu0 0
    %505 = vmatpush1.bf16.msra.mxu0 0
    %506 = vmatprep.subr.bf16.mxu0 0
    %507 = vmatpush1.bf16.msra.mxu0 0
    %508 = vmatprep.subr.bf16.mxu0 0
    %509 = vmatpush1.bf16.msra.mxu0 0
    %510 = vmatprep.subr.bf16.mxu0 0
    %511 = vmatpush1.bf16.msra.mxu0 0
    %512 = vmatprep.subr.bf16.mxu0 0
    %513 = vmatpush1.bf16.msra.mxu0 0
    %514 = vmatprep.mubr.bf16.mxu0 0
    %515 = vmatmul.mubr.bf16.gmra.mrb[0].mxu0 %v440
    %v516 = vpop.f32.mrb[0].mxu0
    %v517 = vadd.f32 0.0, %v516
    %v518 = vpop.f32.mrb[0].mxu0
    %v519 = vpop.f32.mrb[0].mxu0
    %v520 = vpop.f32.mrb[0].mxu0
    %521 = vdwg.mxu0
    %v522 = vadd.f32 %v437, %v476
    %v523 = vadd.f32 %v438, %v478
    %v524 = vxor.u32 %v522, 2147483648
    %v525 = vxor.u32 %v523, 2147483648
    %v526 = vmul.f32 %v524, 1.442695
    %v527 = vpow.pop %v526
    %v528 = vmul.f32 %v525, 1.442695
    %v529 = vpow.pop %v528
    %v530 = vadd.f32 %v527, 1.0
    %v531 = vadd.f32 %v529, 1.0
    %v532 = vrcp.pop %v530
    %v533 = vmul.f32 1.0, %v532
    %v534 = vrcp.pop %v531
    %v535 = vmul.f32 1.0, %v534
    %v536 = vadd.f32 %v517, %v77
    %v537 = vmul.f32 %v533, %v536
    %v538 = vadd.f32 %v439, %v537
    %v539 = vtanh.pop %v538
    %v540 = vsub.f32 1.0, %v535
    %v541 = vmul.f32 %v540, %v539
    %v542 = vmul.f32 %v535, %v433
    %v543 = vadd.f32 %v541, %v542
    %s544 = smul.u32 4, 3
    %s545 = smul.addr %s544, 8
    %s546 = scalar_lea.vmem [#allocation5], %s545
    %v547 = vld [vmem:[%s546] sm:$0xff]
    %v548 = vld [vmem:[%s546 + $0x8] sm:$0xff]
    %v549 = vld [vmem:[%s546 + $0x10] sm:$0xff]
    %v550 = vpack.c.bf16 %v543, %v543
    %551 = vmatprep.subr.bf16.mxu0 %v88
    %552 = vmatpush1.bf16.msra.mxu0 %v87
    %553 = vmatprep.subr.bf16.mxu0 %v91
    %554 = vmatpush1.bf16.msra.mxu0 %v90
    %555 = vmatprep.subr.bf16.mxu0 %v94
    %556 = vmatpush1.bf16.msra.mxu0 %v93
    %557 = vmatprep.subr.bf16.mxu0 %v97
    %558 = vmatpush1.bf16.msra.mxu0 %v96
    %559 = vmatprep.subr.bf16.mxu0 %v100
    %560 = vmatpush1.bf16.msra.mxu0 %v99
    %561 = vmatprep.subr.bf16.mxu0 %v103
    %562 = vmatpush1.bf16.msra.mxu0 %v102
    %563 = vmatprep.subr.bf16.mxu0 %v106
    %564 = vmatpush1.bf16.msra.mxu0 %v105
    %565 = vmatprep.subr.bf16.mxu0 %v109
    %566 = vmatpush1.bf16.msra.mxu0 %v108
    %567 = vmatprep.subr.bf16.mxu0 0
    %568 = vmatpush1.bf16.msra.mxu0 0
    %569 = vmatprep.subr.bf16.mxu0 0
    %570 = vmatpush1.bf16.msra.mxu0 0
    %571 = vmatprep.subr.bf16.mxu0 0
    %572 = vmatpush1.bf16.msra.mxu0 0
    %573 = vmatprep.subr.bf16.mxu0 0
    %574 = vmatpush1.bf16.msra.mxu0 0
    %575 = vmatprep.subr.bf16.mxu0 0
    %576 = vmatpush1.bf16.msra.mxu0 0
    %577 = vmatprep.subr.bf16.mxu0 0
    %578 = vmatpush1.bf16.msra.mxu0 0
    %579 = vmatprep.subr.bf16.mxu0 0
    %580 = vmatpush1.bf16.msra.mxu0 0
    %581 = vmatprep.subr.bf16.mxu0 0
    %582 = vmatpush1.bf16.msra.mxu0 0
    %583 = vmatprep.mubr.bf16.mxu0 0
    %584 = vmatmul.mubr.bf16.gmra.mrb[0].mxu0 %v550
    %v585 = vpop.f32.mrb[0].mxu0
    %v586 = vadd.f32 0.0, %v585
    %v587 = vpop.f32.mrb[0].mxu0
    %v588 = vadd.f32 0.0, %v587
    %v589 = vpop.f32.mrb[0].mxu0
    %v590 = vpop.f32.mrb[0].mxu0
    %591 = vdwg.mxu0
    %592 = vmatprep.subr.bf16.mxu0 0
    %593 = vmatpush1.bf16.msra.mxu0 %v89
    %594 = vmatprep.subr.bf16.mxu0 0
    %595 = vmatpush1.bf16.msra.mxu0 %v92
    %596 = vmatprep.subr.bf16.mxu0 0
    %597 = vmatpush1.bf16.msra.mxu0 %v95
    %598 = vmatprep.subr.bf16.mxu0 0
    %599 = vmatpush1.bf16.msra.mxu0 %v98
    %600 = vmatprep.subr.bf16.mxu0 0
    %601 = vmatpush1.bf16.msra.mxu0 %v101
    %602 = vmatprep.subr.bf16.mxu0 0
    %603 = vmatpush1.bf16.msra.mxu0 %v104
    %604 = vmatprep.subr.bf16.mxu0 0
    %605 = vmatpush1.bf16.msra.mxu0 %v107
    %606 = vmatprep.subr.bf16.mxu0 0
    %607 = vmatpush1.bf16.msra.mxu0 %v110
    %608 = vmatprep.subr.bf16.mxu0 0
    %609 = vmatpush1.bf16.msra.mxu0 0
    %610 = vmatprep.subr.bf16.mxu0 0
    %611 = vmatpush1.bf16.msra.mxu0 0
    %612 = vmatprep.subr.bf16.mxu0 0
    %613 = vmatpush1.bf16.msra.mxu0 0
    %614 = vmatprep.subr.bf16.mxu0 0
    %615 = vmatpush1.bf16.msra.mxu0 0
    %616 = vmatprep.subr.bf16.mxu0 0
    %617 = vmatpush1.bf16.msra.mxu0 0
    %618 = vmatprep.subr.bf16.mxu0 0
    %619 = vmatpush1.bf16.msra.mxu0 0
    %620 = vmatprep.subr.bf16.mxu0 0
    %621 = vmatpush1.bf16.msra.mxu0 0
    %622 = vmatprep.subr.bf16.mxu0 0
    %623 = vmatpush1.bf16.msra.mxu0 0
    %624 = vmatprep.mubr.bf16.mxu0 0
    %625 = vmatmul.mubr.bf16.gmra.mrb[0].mxu0 %v550
    %v626 = vpop.f32.mrb[0].mxu0
    %v627 = vadd.f32 0.0, %v626
    %v628 = vpop.f32.mrb[0].mxu0
    %v629 = vpop.f32.mrb[0].mxu0
    %v630 = vpop.f32.mrb[0].mxu0
    %631 = vdwg.mxu0
    %v632 = vadd.f32 %v547, %v586
    %v633 = vadd.f32 %v548, %v588
    %v634 = vxor.u32 %v632, 2147483648
    %v635 = vxor.u32 %v633, 2147483648
    %v636 = vmul.f32 %v634, 1.442695
    %v637 = vpow.pop %v636
    %v638 = vmul.f32 %v635, 1.442695
    %v639 = vpow.pop %v638
    %v640 = vadd.f32 %v637, 1.0
    %v641 = vadd.f32 %v639, 1.0
    %v642 = vrcp.pop %v640
    %v643 = vmul.f32 1.0, %v642
    %v644 = vrcp.pop %v641
    %v645 = vmul.f32 1.0, %v644
    %v646 = vadd.f32 %v627, %v77
    %v647 = vmul.f32 %v643, %v646
    %v648 = vadd.f32 %v549, %v647
    %v649 = vtanh.pop %v648
    %v650 = vsub.f32 1.0, %v645
    %v651 = vmul.f32 %v650, %v649
    %v652 = vmul.f32 %v645, %v543
    %v653 = vadd.f32 %v651, %v652
    %s654 = smul.u32 5, 3
    %s655 = smul.addr %s654, 8
    %s656 = scalar_lea.vmem [#allocation5], %s655
    %v657 = vld [vmem:[%s656] sm:$0xff]
    %v658 = vld [vmem:[%s656 + $0x8] sm:$0xff]
    %v659 = vld [vmem:[%s656 + $0x10] sm:$0xff]
    %v660 = vpack.c.bf16 %v653, %v653
    %661 = vmatprep.subr.bf16.mxu0 %v88
    %662 = vmatpush1.bf16.msra.mxu0 %v87
    %663 = vmatprep.subr.bf16.mxu0 %v91
    %664 = vmatpush1.bf16.msra.mxu0 %v90
    %665 = vmatprep.subr.bf16.mxu0 %v94
    %666 = vmatpush1.bf16.msra.mxu0 %v93
    %667 = vmatprep.subr.bf16.mxu0 %v97
    %668 = vmatpush1.bf16.msra.mxu0 %v96
    %669 = vmatprep.subr.bf16.mxu0 %v100
    %670 = vmatpush1.bf16.msra.mxu0 %v99
    %671 = vmatprep.subr.bf16.mxu0 %v103
    %672 = vmatpush1.bf16.msra.mxu0 %v102
    %673 = vmatprep.subr.bf16.mxu0 %v106
    %674 = vmatpush1.bf16.msra.mxu0 %v105
    %675 = vmatprep.subr.bf16.mxu0 %v109
    %676 = vmatpush1.bf16.msra.mxu0 %v108
    %677 = vmatprep.subr.bf16.mxu0 0
    %678 = vmatpush1.bf16.msra.mxu0 0
    %679 = vmatprep.subr.bf16.mxu0 0
    %680 = vmatpush1.bf16.msra.mxu0 0
    %681 = vmatprep.subr.bf16.mxu0 0
    %682 = vmatpush1.bf16.msra.mxu0 0
    %683 = vmatprep.subr.bf16.mxu0 0
    %684 = vmatpush1.bf16.msra.mxu0 0
    %685 = vmatprep.subr.bf16.mxu0 0
    %686 = vmatpush1.bf16.msra.mxu0 0
    %687 = vmatprep.subr.bf16.mxu0 0
    %688 = vmatpush1.bf16.msra.mxu0 0
    %689 = vmatprep.subr.bf16.mxu0 0
    %690 = vmatpush1.bf16.msra.mxu0 0
    %691 = vmatprep.subr.bf16.mxu0 0
    %692 = vmatpush1.bf16.msra.mxu0 0
    %693 = vmatprep.mubr.bf16.mxu0 0
    %694 = vmatmul.mubr.bf16.gmra.mrb[0].mxu0 %v660
    %v695 = vpop.f32.mrb[0].mxu0
    %v696 = vadd.f32 0.0, %v695
    %v697 = vpop.f32.mrb[0].mxu0
    %v698 = vadd.f32 0.0, %v697
    %v699 = vpop.f32.mrb[0].mxu0
    %v700 = vpop.f32.mrb[0].mxu0
    %701 = vdwg.mxu0
    %702 = vmatprep.subr.bf16.mxu0 0
    %703 = vmatpush1.bf16.msra.mxu0 %v89
    %704 = vmatprep.subr.bf16.mxu0 0
    %705 = vmatpush1.bf16.msra.mxu0 %v92
    %706 = vmatprep.subr.bf16.mxu0 0
    %707 = vmatpush1.bf16.msra.mxu0 %v95
    %708 = vmatprep.subr.bf16.mxu0 0
    %709 = vmatpush1.bf16.msra.mxu0 %v98
    %710 = vmatprep.subr.bf16.mxu0 0
    %711 = vmatpush1.bf16.msra.mxu0 %v101
    %712 = vmatprep.subr.bf16.mxu0 0
    %713 = vmatpush1.bf16.msra.mxu0 %v104
    %714 = vmatprep.subr.bf16.mxu0 0
    %715 = vmatpush1.bf16.msra.mxu0 %v107
    %716 = vmatprep.subr.bf16.mxu0 0
    %717 = vmatpush1.bf16.msra.mxu0 %v110
    %718 = vmatprep.subr.bf16.mxu0 0
    %719 = vmatpush1.bf16.msra.mxu0 0
    %720 = vmatprep.subr.bf16.mxu0 0
    %721 = vmatpush1.bf16.msra.mxu0 0
    %722 = vmatprep.subr.bf16.mxu0 0
    %723 = vmatpush1.bf16.msra.mxu0 0
    %724 = vmatprep.subr.bf16.mxu0 0
    %725 = vmatpush1.bf16.msra.mxu0 0
    %726 = vmatprep.subr.bf16.mxu0 0
    %727 = vmatpush1.bf16.msra.mxu0 0
    %728 = vmatprep.subr.bf16.mxu0 0
    %729 = vmatpush1.bf16.msra.mxu0 0
    %730 = vmatprep.subr.bf16.mxu0 0
    %731 = vmatpush1.bf16.msra.mxu0 0
    %732 = vmatprep.subr.bf16.mxu0 0
    %733 = vmatpush1.bf16.msra.mxu0 0
    %734 = vmatprep.mubr.bf16.mxu0 0
    %735 = vmatmul.mubr.bf16.gmra.mrb[0].mxu0 %v660
    %v736 = vpop.f32.mrb[0].mxu0
    %v737 = vadd.f32 0.0, %v736
    %v738 = vpop.f32.mrb[0].mxu0
    %v739 = vpop.f32.mrb[0].mxu0
    %v740 = vpop.f32.mrb[0].mxu0
    %741 = vdwg.mxu0
    %v742 = vadd.f32 %v657, %v696
    %v743 = vadd.f32 %v658, %v698
    %v744 = vxor.u32 %v742, 2147483648
    %v745 = vxor.u32 %v743, 2147483648
    %v746 = vmul.f32 %v744, 1.442695
    %v747 = vpow.pop %v746
    %v748 = vmul.f32 %v745, 1.442695
    %v749 = vpow.pop %v748
    %v750 = vadd.f32 %v747, 1.0
    %v751 = vadd.f32 %v749, 1.0
    %v752 = vrcp.pop %v750
    %v753 = vmul.f32 1.0, %v752
    %v754 = vrcp.pop %v751
    %v755 = vmul.f32 1.0, %v754
    %v756 = vadd.f32 %v737, %v77
    %v757 = vmul.f32 %v753, %v756
    %v758 = vadd.f32 %v659, %v757
    %v759 = vtanh.pop %v758
    %v760 = vsub.f32 1.0, %v755
    %v761 = vmul.f32 %v760, %v759
    %v762 = vmul.f32 %v755, %v653
    %v763 = vadd.f32 %v761, %v762
    %s764 = smul.u32 6, 3
    %s765 = smul.addr %s764, 8
    %s766 = scalar_lea.vmem [#allocation5], %s765
    %v767 = vld [vmem:[%s766] sm:$0xff]
    %v768 = vld [vmem:[%s766 + $0x8] sm:$0xff]
    %v769 = vld [vmem:[%s766 + $0x10] sm:$0xff]
    %v770 = vpack.c.bf16 %v763, %v763
    %771 = vmatprep.subr.bf16.mxu0 %v88
    %772 = vmatpush1.bf16.msra.mxu0 %v87
    %773 = vmatprep.subr.bf16.mxu0 %v91
    %774 = vmatpush1.bf16.msra.mxu0 %v90
    %775 = vmatprep.subr.bf16.mxu0 %v94
    %776 = vmatpush1.bf16.msra.mxu0 %v93
    %777 = vmatprep.subr.bf16.mxu0 %v97
    %778 = vmatpush1.bf16.msra.mxu0 %v96
    %779 = vmatprep.subr.bf16.mxu0 %v100
    %780 = vmatpush1.bf16.msra.mxu0 %v99
    %781 = vmatprep.subr.bf16.mxu0 %v103
    %782 = vmatpush1.bf16.msra.mxu0 %v102
    %783 = vmatprep.subr.bf16.mxu0 %v106
    %784 = vmatpush1.bf16.msra.mxu0 %v105
    %785 = vmatprep.subr.bf16.mxu0 %v109
    %786 = vmatpush1.bf16.msra.mxu0 %v108
    %787 = vmatprep.subr.bf16.mxu0 0
    %788 = vmatpush1.bf16.msra.mxu0 0
    %789 = vmatprep.subr.bf16.mxu0 0
    %790 = vmatpush1.bf16.msra.mxu0 0
    %791 = vmatprep.subr.bf16.mxu0 0
    %792 = vmatpush1.bf16.msra.mxu0 0
    %793 = vmatprep.subr.bf16.mxu0 0
    %794 = vmatpush1.bf16.msra.mxu0 0
    %795 = vmatprep.subr.bf16.mxu0 0
    %796 = vmatpush1.bf16.msra.mxu0 0
    %797 = vmatprep.subr.bf16.mxu0 0
    %798 = vmatpush1.bf16.msra.mxu0 0
    %799 = vmatprep.subr.bf16.mxu0 0
    %800 = vmatpush1.bf16.msra.mxu0 0
    %801 = vmatprep.subr.bf16.mxu0 0
    %802 = vmatpush1.bf16.msra.mxu0 0
    %803 = vmatprep.mubr.bf16.mxu0 0
    %804 = vmatmul.mubr.bf16.gmra.mrb[0].mxu0 %v770
    %v805 = vpop.f32.mrb[0].mxu0
    %v806 = vadd.f32 0.0, %v805
    %v807 = vpop.f32.mrb[0].mxu0
    %v808 = vadd.f32 0.0, %v807
    %v809 = vpop.f32.mrb[0].mxu0
    %v810 = vpop.f32.mrb[0].mxu0
    %811 = vdwg.mxu0
    %812 = vmatprep.subr.bf16.mxu0 0
    %813 = vmatpush1.bf16.msra.mxu0 %v89
    %814 = vmatprep.subr.bf16.mxu0 0
    %815 = vmatpush1.bf16.msra.mxu0 %v92
    %816 = vmatprep.subr.bf16.mxu0 0
    %817 = vmatpush1.bf16.msra.mxu0 %v95
    %818 = vmatprep.subr.bf16.mxu0 0
    %819 = vmatpush1.bf16.msra.mxu0 %v98
    %820 = vmatprep.subr.bf16.mxu0 0
    %821 = vmatpush1.bf16.msra.mxu0 %v101
    %822 = vmatprep.subr.bf16.mxu0 0
    %823 = vmatpush1.bf16.msra.mxu0 %v104
    %824 = vmatprep.subr.bf16.mxu0 0
    %825 = vmatpush1.bf16.msra.mxu0 %v107
    %826 = vmatprep.subr.bf16.mxu0 0
    %827 = vmatpush1.bf16.msra.mxu0 %v110
    %828 = vmatprep.subr.bf16.mxu0 0
    %829 = vmatpush1.bf16.msra.mxu0 0
    %830 = vmatprep.subr.bf16.mxu0 0
    %831 = vmatpush1.bf16.msra.mxu0 0
    %832 = vmatprep.subr.bf16.mxu0 0
    %833 = vmatpush1.bf16.msra.mxu0 0
    %834 = vmatprep.subr.bf16.mxu0 0
    %835 = vmatpush1.bf16.msra.mxu0 0
    %836 = vmatprep.subr.bf16.mxu0 0
    %837 = vmatpush1.bf16.msra.mxu0 0
    %838 = vmatprep.subr.bf16.mxu0 0
    %839 = vmatpush1.bf16.msra.mxu0 0
    %840 = vmatprep.subr.bf16.mxu0 0
    %841 = vmatpush1.bf16.msra.mxu0 0
    %842 = vmatprep.subr.bf16.mxu0 0
    %843 = vmatpush1.bf16.msra.mxu0 0
    %844 = vmatprep.mubr.bf16.mxu0 0
    %845 = vmatmul.mubr.bf16.gmra.mrb[0].mxu0 %v770
    %v846 = vpop.f32.mrb[0].mxu0
    %v847 = vadd.f32 0.0, %v846
    %v848 = vpop.f32.mrb[0].mxu0
    %v849 = vpop.f32.mrb[0].mxu0
    %v850 = vpop.f32.mrb[0].mxu0
    %851 = vdwg.mxu0
    %v852 = vadd.f32 %v767, %v806
    %v853 = vadd.f32 %v768, %v808
    %v854 = vxor.u32 %v852, 2147483648
    %v855 = vxor.u32 %v853, 2147483648
    %v856 = vmul.f32 %v854, 1.442695
    %v857 = vpow.pop %v856
    %v858 = vmul.f32 %v855, 1.442695
    %v859 = vpow.pop %v858
    %v860 = vadd.f32 %v857, 1.0
    %v861 = vadd.f32 %v859, 1.0
    %v862 = vrcp.pop %v860
    %v863 = vmul.f32 1.0, %v862
    %v864 = vrcp.pop %v861
    %v865 = vmul.f32 1.0, %v864
    %v866 = vadd.f32 %v847, %v77
    %v867 = vmul.f32 %v863, %v866
    %v868 = vadd.f32 %v769, %v867
    %v869 = vtanh.pop %v868
    %v870 = vsub.f32 1.0, %v865
    %v871 = vmul.f32 %v870, %v869
    %v872 = vmul.f32 %v865, %v763
    %v873 = vadd.f32 %v871, %v872
    %s874 = smul.u32 7, 3
    %s875 = smul.addr %s874, 8
    %s876 = scalar_lea.vmem [#allocation5], %s875
    %v877 = vld [vmem:[%s876] sm:$0xff]
    %v878 = vld [vmem:[%s876 + $0x8] sm:$0xff]
    %v879 = vld [vmem:[%s876 + $0x10] sm:$0xff]
    %v880 = vpack.c.bf16 %v873, %v873
    %881 = vmatprep.subr.bf16.mxu0 %v88
    %882 = vmatpush1.bf16.msra.mxu0 %v87
    %883 = vmatprep.subr.bf16.mxu0 %v91
    %884 = vmatpush1.bf16.msra.mxu0 %v90
    %885 = vmatprep.subr.bf16.mxu0 %v94
    %886 = vmatpush1.bf16.msra.mxu0 %v93
    %887 = vmatprep.subr.bf16.mxu0 %v97
    %888 = vmatpush1.bf16.msra.mxu0 %v96
    %889 = vmatprep.subr.bf16.mxu0 %v100
    %890 = vmatpush1.bf16.msra.mxu0 %v99
    %891 = vmatprep.subr.bf16.mxu0 %v103
    %892 = vmatpush1.bf16.msra.mxu0 %v102
    %893 = vmatprep.subr.bf16.mxu0 %v106
    %894 = vmatpush1.bf16.msra.mxu0 %v105
    %895 = vmatprep.subr.bf16.mxu0 %v109
    %896 = vmatpush1.bf16.msra.mxu0 %v108
    %897 = vmatprep.subr.bf16.mxu0 0
    %898 = vmatpush1.bf16.msra.mxu0 0
    %899 = vmatprep.subr.bf16.mxu0 0
    %900 = vmatpush1.bf16.msra.mxu0 0
    %901 = vmatprep.subr.bf16.mxu0 0
    %902 = vmatpush1.bf16.msra.mxu0 0
    %903 = vmatprep.subr.bf16.mxu0 0
    %904 = vmatpush1.bf16.msra.mxu0 0
    %905 = vmatprep.subr.bf16.mxu0 0
    %906 = vmatpush1.bf16.msra.mxu0 0
    %907 = vmatprep.subr.bf16.mxu0 0
    %908 = vmatpush1.bf16.msra.mxu0 0
    %909 = vmatprep.subr.bf16.mxu0 0
    %910 = vmatpush1.bf16.msra.mxu0 0
    %911 = vmatprep.subr.bf16.mxu0 0
    %912 = vmatpush1.bf16.msra.mxu0 0
    %913 = vmatprep.mubr.bf16.mxu0 0
    %914 = vmatmul.mubr.bf16.gmra.mrb[0].mxu0 %v880
    %v915 = vpop.f32.mrb[0].mxu0
    %v916 = vadd.f32 0.0, %v915
    %v917 = vpop.f32.mrb[0].mxu0
    %v918 = vadd.f32 0.0, %v917
    %v919 = vpop.f32.mrb[0].mxu0
    %v920 = vpop.f32.mrb[0].mxu0
    %921 = vdwg.mxu0
    %922 = vmatprep.subr.bf16.mxu0 0
    %923 = vmatpush1.bf16.msra.mxu0 %v89
    %924 = vmatprep.subr.bf16.mxu0 0
    %925 = vmatpush1.bf16.msra.mxu0 %v92
    %926 = vmatprep.subr.bf16.mxu0 0
    %927 = vmatpush1.bf16.msra.mxu0 %v95
    %928 = vmatprep.subr.bf16.mxu0 0
    %929 = vmatpush1.bf16.msra.mxu0 %v98
    %930 = vmatprep.subr.bf16.mxu0 0
    %931 = vmatpush1.bf16.msra.mxu0 %v101
    %932 = vmatprep.subr.bf16.mxu0 0
    %933 = vmatpush1.bf16.msra.mxu0 %v104
    %934 = vmatprep.subr.bf16.mxu0 0
    %935 = vmatpush1.bf16.msra.mxu0 %v107
    %936 = vmatprep.subr.bf16.mxu0 0
    %937 = vmatpush1.bf16.msra.mxu0 %v110
    %938 = vmatprep.subr.bf16.mxu0 0
    %939 = vmatpush1.bf16.msra.mxu0 0
    %940 = vmatprep.subr.bf16.mxu0 0
    %941 = vmatpush1.bf16.msra.mxu0 0
    %942 = vmatprep.subr.bf16.mxu0 0
    %943 = vmatpush1.bf16.msra.mxu0 0
    %944 = vmatprep.subr.bf16.mxu0 0
    %945 = vmatpush1.bf16.msra.mxu0 0
    %946 = vmatprep.subr.bf16.mxu0 0
    %947 = vmatpush1.bf16.msra.mxu0 0
    %948 = vmatprep.subr.bf16.mxu0 0
    %949 = vmatpush1.bf16.msra.mxu0 0
    %950 = vmatprep.subr.bf16.mxu0 0
    %951 = vmatpush1.bf16.msra.mxu0 0
    %952 = vmatprep.subr.bf16.mxu0 0
    %953 = vmatpush1.bf16.msra.mxu0 0
    %954 = vmatprep.mubr.bf16.mxu0 0
    %955 = vmatmul.mubr.bf16.gmra.mrb[0].mxu0 %v880
    %v956 = vpop.f32.mrb[0].mxu0
    %v957 = vadd.f32 0.0, %v956
    %v958 = vpop.f32.mrb[0].mxu0
    %v959 = vpop.f32.mrb[0].mxu0
    %v960 = vpop.f32.mrb[0].mxu0
    %961 = vdwg.mxu0
    %v962 = vadd.f32 %v877, %v916
    %v963 = vadd.f32 %v878, %v918
    %v964 = vxor.u32 %v962, 2147483648
    %v965 = vxor.u32 %v963, 2147483648
    %v966 = vmul.f32 %v964, 1.442695
    %v967 = vpow.pop %v966
    %v968 = vmul.f32 %v965, 1.442695
    %v969 = vpow.pop %v968
    %v970 = vadd.f32 %v967, 1.0
    %v971 = vadd.f32 %v969, 1.0
    %v972 = vrcp.pop %v970
    %v973 = vmul.f32 1.0, %v972
    %v974 = vrcp.pop %v971
    %v975 = vmul.f32 1.0, %v974
    %v976 = vadd.f32 %v957, %v77
    %v977 = vmul.f32 %v973, %v976
    %v978 = vadd.f32 %v879, %v977
    %v979 = vtanh.pop %v978
    %v980 = vsub.f32 1.0, %v975
    %v981 = vmul.f32 %v980, %v979
    %v982 = vmul.f32 %v975, %v873
    %v983 = vadd.f32 %v981, %v982
    %984 = vst [vmem:[#allocation3] sm:$0xff] %v983
    %985 = vst [vmem:[#allocation8] sm:$0xff] %v983
    // Predicated region
    $region18: #{tpu_custom_call.1} parent=1 // pred_check
      _
    $region19: #{tpu_custom_call.1} parent=1 // pred_check_branch
      %987 = sbr.rel (0) target = $region21
    $region20: #{tpu_custom_call.1} parent=1 // pred_region
      %s989 = ssub.s32 128, 128
      %990 = vsyncadd [#allocation7], %s989
      %s992 = sshll.u32 [#allocation8], 4
      %s993 = int_to_ptr.vmem [resolvable:$true] %s992
      %995 = dma.vmem_to_hbm [thread:$0]  %s993, 128, %s3, [#allocation7]
    $region21: #{tpu_custom_call.1} parent=1 // pred_fallthru
      _
    // Predicated region
    $region22: #{tpu_custom_call.1} parent=1 // pred_check
      _
    $region23: #{tpu_custom_call.1} parent=1 // pred_check_branch
      %997 = sbr.rel (0) target = $region25
    $region24: #{tpu_custom_call.1} parent=1 // pred_region
      %998 = dma.done [#allocation7], 128
    $region25: #{tpu_custom_call.1} parent=1 // pred_fallthru
      _
    %999 = vsyncpa [#allocation6], 1
    %1000 = vsyncpa [#allocation7], 1
  %1001 = vsyncmov [#allocation4]
  %s1002 = vpop.sfrf %1001
  %p1003 = scmp.eq.s32.totalorder %s1002, 0
  %p1004 = pneg %p1003
  %1006 = shalt.err (%p1004)

</llo_original>
